<compile_context>
chip_gen: v6e
topology: v6e:2x2x1
jax: 0.10.0
libtpu: 0.0.40
codegen_flags: <defaults>
</compile_context>

<pallas_src>
import functools

import jax
import jax.numpy as jnp
from jax import lax
from jax.experimental import pallas as pl
from jax.experimental.pallas import tpu as pltpu


# ----------------------------------------------------------------------------
# Shared conv helper: 3x3 "SAME" conv of a padded (H+2, W+2, C) VMEM scratch as
# one im2col matmul (H*W, 9C) @ (9C, C).
# ----------------------------------------------------------------------------
def _conv3x3_from_padded(pad_ref, w_ref, H, W, C):
    xp = pad_ref[...]                                   # (H+2, W+2, C)
    cols = []
    for dy in range(3):
        for dx in range(3):
            cols.append(xp[dy:dy + H, dx:dx + W, :].reshape(H * W, C))
    patches = jnp.concatenate(cols, axis=-1)            # (H*W, 9*C) -> K=9C contraction
    return jnp.dot(patches, w_ref[...], preferred_element_type=jnp.float32)


# ----------------------------------------------------------------------------
# Kernel A: conv1 + per-batch BN1 partial sums.  One batch element per grid step.
# ----------------------------------------------------------------------------
def _conv1_kernel(x_ref, w_ref, y_ref, s_ref, q_ref, pad_ref, *, H, W, C):
    # zero-pad in VMEM (no jnp.pad HBM round-trip)
    pad_ref[...] = jnp.zeros_like(pad_ref)
    pad_ref[pl.ds(1, H), pl.ds(1, W), :] = x_ref[0]
    y = _conv3x3_from_padded(pad_ref, w_ref, H, W, C)   # (H*W, C), f32
    y_ref[0] = y
    s_ref[0] = jnp.sum(y, axis=0, keepdims=True)        # (1, C) partial sum
    q_ref[0] = jnp.sum(y * y, axis=0, keepdims=True)    # (1, C) partial sum of squares


def conv1_with_stats(x, w_mat):
    N, H, W, C = x.shape
    kern = functools.partial(_conv1_kernel, H=H, W=W, C=C)
    y, s, q = pl.pallas_call(
        kern,
        out_shape=(
            jax.ShapeDtypeStruct((N, H * W, C), jnp.float32),
            jax.ShapeDtypeStruct((N, 1, C), jnp.float32),
            jax.ShapeDtypeStruct((N, 1, C), jnp.float32),
        ),
        grid_spec=pltpu.PrefetchScalarGridSpec(
            num_scalar_prefetch=0,
            grid=(N,),
            in_specs=[
                pl.BlockSpec((1, H, W, C), lambda n: (n, 0, 0, 0)),
                pl.BlockSpec((9 * C, C), lambda n: (0, 0)),
            ],
            out_specs=[
                pl.BlockSpec((1, H * W, C), lambda n: (n, 0, 0)),
                pl.BlockSpec((1, 1, C), lambda n: (n, 0, 0)),
                pl.BlockSpec((1, 1, C), lambda n: (n, 0, 0)),
            ],
            scratch_shapes=[pltpu.VMEM((H + 2, W + 2, C), jnp.float32)],
        ),
        compiler_params=pltpu.CompilerParams(dimension_semantics=("parallel",)),
    )(x, w_mat)
    return y, s[:, 0, :], q[:, 0, :]


# ----------------------------------------------------------------------------
# Kernel B: BN1 + PReLU fused onto the activation, then conv2 + BN2 partial sums.
# ----------------------------------------------------------------------------
def _conv2_kernel(y1_ref, w_ref, sc_ref, sh_ref, alpha_ref,
                  y_ref, s_ref, q_ref, pad_ref, *, H, W, C):
    a = alpha_ref[0, 0]                                  # PReLU slope (SMEM scalar)
    z = y1_ref[0] * sc_ref[0] + sh_ref[0]                # BN1 apply
    z = jnp.where(z >= 0.0, z, z * a)                    # PReLU
    pad_ref[...] = jnp.zeros_like(pad_ref)               # zero halo for 'SAME' conv
    pad_ref[pl.ds(1, H), pl.ds(1, W), :] = z
    y = _conv3x3_from_padded(pad_ref, w_ref, H, W, C)    # (H*W, C), f32
    y_ref[0] = y
    s_ref[0] = jnp.sum(y, axis=0, keepdims=True)
    q_ref[0] = jnp.sum(y * y, axis=0, keepdims=True)


def conv2_fused_bn_prelu(y1_4d, w_mat, sc1, sh1, alpha):
    N, H, W, C = y1_4d.shape
    kern = functools.partial(_conv2_kernel, H=H, W=W, C=C)
    y, s, q = pl.pallas_call(
        kern,
        out_shape=(
            jax.ShapeDtypeStruct((N, H * W, C), jnp.float32),
            jax.ShapeDtypeStruct((N, 1, C), jnp.float32),
            jax.ShapeDtypeStruct((N, 1, C), jnp.float32),
        ),
        grid_spec=pltpu.PrefetchScalarGridSpec(
            num_scalar_prefetch=0,
            grid=(N,),
            in_specs=[
                pl.BlockSpec((1, H, W, C), lambda n: (n, 0, 0, 0)),
                pl.BlockSpec((9 * C, C), lambda n: (0, 0)),
                pl.BlockSpec((1, C), lambda n: (0, 0)),
                pl.BlockSpec((1, C), lambda n: (0, 0)),
                pl.BlockSpec((1, 1), lambda n: (0, 0),
                             memory_space=pltpu.MemorySpace.SMEM),
            ],
            out_specs=[
                pl.BlockSpec((1, H * W, C), lambda n: (n, 0, 0)),
                pl.BlockSpec((1, 1, C), lambda n: (n, 0, 0)),
                pl.BlockSpec((1, 1, C), lambda n: (n, 0, 0)),
            ],
            scratch_shapes=[pltpu.VMEM((H + 2, W + 2, C), jnp.float32)],
        ),
        compiler_params=pltpu.CompilerParams(dimension_semantics=("parallel",)),
    )(y1_4d, w_mat, sc1.reshape(1, C), sh1.reshape(1, C), alpha.reshape(1, 1))
    return y, s[:, 0, :], q[:, 0, :]


# ----------------------------------------------------------------------------
# Kernel C: out = x + (y2*scale2 + shift2) * att, lane-dense (N, H, W*C) layout.
# ----------------------------------------------------------------------------
def _bn_att_residual_kernel(x_ref, y_ref, sc_ref, sh_ref, att_ref, o_ref):
    o_ref[...] = x_ref[...] + (y_ref[...] * sc_ref[0] + sh_ref[0]) * att_ref[0]


def bn_att_residual(x, y2_flat, sc2, sh2, att):
    N, H, W, C = x.shape
    WC = W * C
    x2 = x.reshape(N, H, WC)                         # free: merges trailing dims
    y2 = y2_flat.reshape(N, H, WC)                   # free: (N, H*W, C) -> (N, H, W*C)
    sct = jnp.tile(sc2, W).reshape(1, WC)            # per-channel -> lane-dense width
    sht = jnp.tile(sh2, W).reshape(1, WC)
    attt = jnp.tile(att, (1, W)).reshape(N, 1, WC)
    out = pl.pallas_call(
        _bn_att_residual_kernel,
        out_shape=jax.ShapeDtypeStruct((N, H, WC), jnp.float32),
        grid_spec=pltpu.PrefetchScalarGridSpec(
            num_scalar_prefetch=0,
            grid=(N,),
            in_specs=[
                pl.BlockSpec((1, H, WC), lambda n: (n, 0, 0)),
                pl.BlockSpec((1, H, WC), lambda n: (n, 0, 0)),
                pl.BlockSpec((1, WC), lambda n: (0, 0)),
                pl.BlockSpec((1, WC), lambda n: (0, 0)),
                pl.BlockSpec((1, 1, WC), lambda n: (n, 0, 0)),
            ],
            out_specs=pl.BlockSpec((1, H, WC), lambda n: (n, 0, 0)),
        ),
        compiler_params=pltpu.CompilerParams(dimension_semantics=("parallel",)),
    )(x2, y2, sct, sht, attt)
    return out.reshape(N, H, W, C)


# ----------------------------------------------------------------------------
# Glue: BN scale/shift from per-batch partial sums (training mode, biased variance).
# ----------------------------------------------------------------------------
def bn_scale_shift_from_sums(s, q, count, gamma, beta, eps=1e-5):
    ssum = jnp.sum(s, axis=0)                        # (C,)
    qsum = jnp.sum(q, axis=0)                        # (C,)
    mean = ssum / count
    var = jnp.maximum(qsum / count - mean * mean, 0.0)
    scale = gamma * lax.rsqrt(var + eps)
    shift = beta - mean * scale
    return scale, shift


def residual_block_forward(x, p):
    N, H, W, C = x.shape
    count = N * H * W
    w1m = p["w1"].reshape(9 * C, C)                  # HWIO -> (9*C, C) im2col weight
    w2m = p["w2"].reshape(9 * C, C)

    # conv1 (+ BN1 partial sums).  Conv bias b1 omitted: exactly cancelled by BN1.
    y1_flat, s1, q1 = conv1_with_stats(x, w1m)
    sc1, sh1 = bn_scale_shift_from_sums(s1, q1, count, p["g1"], p["be1"])

    # conv2 with fused BN1+PReLU on its input (+ BN2 partial sums).  b2 omitted (cancelled).
    y1_4d = y1_flat.reshape(N, H, W, C)
    y2_flat, s2, q2 = conv2_fused_bn_prelu(y1_4d, w2m, sc1, sh1, p["alpha"])
    sc2, sh2 = bn_scale_shift_from_sums(s2, q2, count, p["g2"], p["be2"])

    # BAM: avgpool(bn2(y2)) == mean(y2)*scale2 + shift2 exactly; reuse per-batch sums.
    pooled = (s2 / (H * W)) * sc2 + sh2                              # (N, C)
    hidden = jnp.maximum(pooled @ p["wa1"].T + p["ba1"], 0.0)        # (N, C//16)
    att = jax.nn.sigmoid(hidden @ p["wa2"].T + p["ba2"])             # (N, C)

    # fused BN2 apply + attention multiply + residual add (lane-dense).
    return bn_att_residual(x, y2_flat, sc2, sh2, att)


# ----------------------------------------------------------------------------
# Pure-JAX reference (keeps the conv biases; BN cancels them, results identical).
# ----------------------------------------------------------------------------
def ref_forward(x, p):
    def conv(z, w, b):
        return lax.conv_general_dilated(
            z, w, (1, 1), "SAME",
            dimension_numbers=("NHWC", "HWIO", "NHWC")) + b

    def bn(y, g, be):
        m = jnp.mean(y, axis=(0, 1, 2))
        v = jnp.mean((y - m) ** 2, axis=(0, 1, 2))
        return (y - m) * lax.rsqrt(v + 1e-5) * g + be

    r = conv(x, p["w1"], p["b1"])
    r = bn(r, p["g1"], p["be1"])
    r = jnp.where(r >= 0, r, p["alpha"][0] * r)
    r = conv(r, p["w2"], p["b2"])
    r = bn(r, p["g2"], p["be2"])
    pooled = jnp.mean(r, axis=(1, 2))
    h = jnp.maximum(pooled @ p["wa1"].T + p["ba1"], 0.0)
    att = jax.nn.sigmoid(h @ p["wa2"].T + p["ba2"])
    return x + r * att[:, None, None, :]


if __name__ == "__main__":
    # channels must be >= 16 so BAM's channels // 16 bottleneck is non-degenerate;
    # W*C = 256 also makes the elementwise kernel lane-dense (multiple of 128).
    N, H, W, C = 2, 16, 16, 16
    Cr = C // 16

    key = jax.random.PRNGKey(0)
    ks = jax.random.split(key, 12)
    params = {
        "w1": 0.1 * jax.random.normal(ks[0], (3, 3, C, C), jnp.float32),   # HWIO
        "b1": 0.1 * jax.random.normal(ks[1], (C,), jnp.float32),           # cancelled by BN1
        "g1": 1.0 + 0.1 * jax.random.normal(ks[2], (C,), jnp.float32),
        "be1": 0.1 * jax.random.normal(ks[3], (C,), jnp.float32),
        "alpha": jnp.array([0.25], jnp.float32),                            # PReLU default init
        "w2": 0.1 * jax.random.normal(ks[4], (3, 3, C, C), jnp.float32),
        "b2": 0.1 * jax.random.normal(ks[5], (C,), jnp.float32),           # cancelled by BN2
        "g2": 1.0 + 0.1 * jax.random.normal(ks[6], (C,), jnp.float32),
        "be2": 0.1 * jax.random.normal(ks[7], (C,), jnp.float32),
        "wa1": 0.1 * jax.random.normal(ks[8], (Cr, C), jnp.float32),        # 1x1 conv C->C/16
        "ba1": 0.1 * jax.random.normal(ks[9], (Cr,), jnp.float32),
        "wa2": 0.1 * jax.random.normal(ks[10], (C, Cr), jnp.float32),       # 1x1 conv C/16->C
        "ba2": 0.1 * jax.random.normal(ks[11], (C,), jnp.float32),
    }

    # x corresponds to PyTorch NCHW (2, 16, 16, 16); kernels use NHWC (2, 16, 16, 16).
    x = jax.random.normal(jax.random.PRNGKey(1), (N, H, W, C), jnp.float32)

    out = jax.block_until_ready(residual_block_forward(x, params))
    ref = jax.block_until_ready(ref_forward(x, params))

    assert out.shape == (N, H, W, C)
    assert jnp.allclose(out, ref, atol=1e-4, rtol=1e-4), (
        f"max diff {jnp.max(jnp.abs(out - ref))}")

    print("KERNEL_OK")
</pallas_src>

<mosaic_0001>
module attributes {stable_mosaic.version = 11 : i64} {
  func.func @_conv1_kernel(%arg0: i32, %arg1: memref<1x16x16x16xf32, #tpu.memory_space<vmem>>, %arg2: memref<144x16xf32, #tpu.memory_space<vmem>>, %arg3: memref<1x256x16xf32, #tpu.memory_space<vmem>>, %arg4: memref<1x1x16xf32, #tpu.memory_space<vmem>>, %arg5: memref<1x1x16xf32, #tpu.memory_space<vmem>>, %arg6: memref<18x18x16xf32, #tpu.memory_space<vmem>>) attributes {dimension_semantics = [#tpu.dimension_semantics<parallel>], iteration_bounds = array<i64: 2>, scalar_prefetch = 0 : i64, scratch_operands = 1 : i64, tpu.core_type = #tpu.core_type<tc>, window_params = [{transform_indices = @transform_0, window_bounds = array<i64: 1, 16, 16, 16>}, {pipeline_mode = #tpu.pipeline_mode<synchronous>, transform_indices = @transform_1, window_bounds = array<i64: 144, 16>}, {transform_indices = @transform_2, window_bounds = array<i64: 1, 256, 16>}, {transform_indices = @transform_3, window_bounds = array<i64: 1, 1, 16>}, {transform_indices = @transform_4, window_bounds = array<i64: 1, 1, 16>}]} {
    %cst = arith.constant 0.000000e+00 : f32
    %0 = vector.broadcast %cst : f32 to vector<18x18x16xf32>
    %c0 = arith.constant 0 : index
    %c0_0 = arith.constant 0 : index
    %c0_1 = arith.constant 0 : index
    %1 = vector.load %arg6[%c0, %c0_0, %c0_1] : memref<18x18x16xf32, #tpu.memory_space<vmem>>, vector<18x18x16xf32>
    tpu.vector_store %arg6[%c0, %c0_0, %c0_1], %0 {strides = array<i32>} : memref<18x18x16xf32, #tpu.memory_space<vmem>>, vector<18x18x16xf32>,
    %c0_2 = arith.constant 0 : index
    %c0_3 = arith.constant 0 : index
    %c0_4 = arith.constant 0 : index
    %c0_5 = arith.constant 0 : index
    %2 = vector.load %arg1[%c0_2, %c0_3, %c0_4, %c0_5] : memref<1x16x16x16xf32, #tpu.memory_space<vmem>>, vector<1x16x16x16xf32>
    %3 = vector.shape_cast %2 : vector<1x16x16x16xf32> to vector<16x16x16xf32>
    %c1 = arith.constant 1 : index
    %c1_6 = arith.constant 1 : index
    %c0_7 = arith.constant 0 : index
    %4 = vector.load %arg6[%c1, %c1_6, %c0_7] : memref<18x18x16xf32, #tpu.memory_space<vmem>>, vector<16x16x16xf32>
    tpu.vector_store %arg6[%c1, %c1_6, %c0_7], %3 {strides = array<i32>} : memref<18x18x16xf32, #tpu.memory_space<vmem>>, vector<16x16x16xf32>,
    %c0_8 = arith.constant 0 : index
    %c0_9 = arith.constant 0 : index
    %c0_10 = arith.constant 0 : index
    %5 = vector.load %arg6[%c0_8, %c0_9, %c0_10] : memref<18x18x16xf32, #tpu.memory_space<vmem>>, vector<18x18x16xf32>
    %6 = vector.extract_strided_slice %5 {offsets = [0, 0, 0], sizes = [16, 16, 16], strides = [1, 1, 1]} : vector<18x18x16xf32> to vector<16x16x16xf32>
    %7 = vector.shape_cast %6 : vector<16x16x16xf32> to vector<256x16xf32>
    %8 = vector.extract_strided_slice %5 {offsets = [0, 1, 0], sizes = [16, 16, 16], strides = [1, 1, 1]} : vector<18x18x16xf32> to vector<16x16x16xf32>
    %9 = vector.shape_cast %8 : vector<16x16x16xf32> to vector<256x16xf32>
    %10 = vector.extract_strided_slice %5 {offsets = [0, 2, 0], sizes = [16, 16, 16], strides = [1, 1, 1]} : vector<18x18x16xf32> to vector<16x16x16xf32>
    %11 = vector.shape_cast %10 : vector<16x16x16xf32> to vector<256x16xf32>
    %12 = vector.extract_strided_slice %5 {offsets = [1, 0, 0], sizes = [16, 16, 16], strides = [1, 1, 1]} : vector<18x18x16xf32> to vector<16x16x16xf32>
    %13 = vector.shape_cast %12 : vector<16x16x16xf32> to vector<256x16xf32>
    %14 = vector.extract_strided_slice %5 {offsets = [1, 1, 0], sizes = [16, 16, 16], strides = [1, 1, 1]} : vector<18x18x16xf32> to vector<16x16x16xf32>
    %15 = vector.shape_cast %14 : vector<16x16x16xf32> to vector<256x16xf32>
    %16 = vector.extract_strided_slice %5 {offsets = [1, 2, 0], sizes = [16, 16, 16], strides = [1, 1, 1]} : vector<18x18x16xf32> to vector<16x16x16xf32>
    %17 = vector.shape_cast %16 : vector<16x16x16xf32> to vector<256x16xf32>
    %18 = vector.extract_strided_slice %5 {offsets = [2, 0, 0], sizes = [16, 16, 16], strides = [1, 1, 1]} : vector<18x18x16xf32> to vector<16x16x16xf32>
    %19 = vector.shape_cast %18 : vector<16x16x16xf32> to vector<256x16xf32>
    %20 = vector.extract_strided_slice %5 {offsets = [2, 1, 0], sizes = [16, 16, 16], strides = [1, 1, 1]} : vector<18x18x16xf32> to vector<16x16x16xf32>
    %21 = vector.shape_cast %20 : vector<16x16x16xf32> to vector<256x16xf32>
    %22 = vector.extract_strided_slice %5 {offsets = [2, 2, 0], sizes = [16, 16, 16], strides = [1, 1, 1]} : vector<18x18x16xf32> to vector<16x16x16xf32>
    %23 = vector.shape_cast %22 : vector<16x16x16xf32> to vector<256x16xf32>
    %24 = tpu.concatenate %7, %9, %11, %13, %15, %17, %19, %21, %23 in 1 : vector<256x16xf32>, vector<256x16xf32>, vector<256x16xf32>, vector<256x16xf32>, vector<256x16xf32>, vector<256x16xf32>, vector<256x16xf32>, vector<256x16xf32>, vector<256x16xf32> -> vector<256x144xf32>
    %c0_11 = arith.constant 0 : index
    %c0_12 = arith.constant 0 : index
    %25 = vector.load %arg2[%c0_11, %c0_12] : memref<144x16xf32, #tpu.memory_space<vmem>>, vector<144x16xf32>
    %cst_13 = arith.constant dense<0.000000e+00> : vector<256x16xf32>
    %26 = tpu.matmul %24, %25, %cst_13 {dimension_numbers = #tpu.dot_dimension_numbers<[1], [0], [0], [1], [0, 0, 1, 1], [], []>} : vector<256x144xf32>, vector<144x16xf32>, vector<256x16xf32> -> vector<256x16xf32>
    %c0_14 = arith.constant 0 : index
    %c0_15 = arith.constant 0 : index
    %c0_16 = arith.constant 0 : index
    %27 = vector.load %arg3[%c0_14, %c0_15, %c0_16] : memref<1x256x16xf32, #tpu.memory_space<vmem>>, vector<1x256x16xf32>
    %28 = vector.shape_cast %27 : vector<1x256x16xf32> to vector<256x16xf32>
    %29 = vector.shape_cast %26 : vector<256x16xf32> to vector<1x256x16xf32>
    tpu.vector_store %arg3[%c0_14, %c0_15, %c0_16], %29 {strides = array<i32>} : memref<1x256x16xf32, #tpu.memory_space<vmem>>, vector<1x256x16xf32>,
    %cst_17 = arith.constant dense<0.000000e+00> : vector<16xf32>
    %30 = vector.multi_reduction <add>, %26, %cst_17 [0] : vector<256x16xf32> to vector<16xf32>
    %31 = vector.shape_cast %30 : vector<16xf32> to vector<1x16xf32>
    %c0_18 = arith.constant 0 : index
    %c0_19 = arith.constant 0 : index
    %c0_20 = arith.constant 0 : index
    %32 = vector.load %arg4[%c0_18, %c0_19, %c0_20] : memref<1x1x16xf32, #tpu.memory_space<vmem>>, vector<1x1x16xf32>
    %33 = vector.shape_cast %32 : vector<1x1x16xf32> to vector<1x16xf32>
    %34 = vector.shape_cast %31 : vector<1x16xf32> to vector<1x1x16xf32>
    tpu.vector_store %arg4[%c0_18, %c0_19, %c0_20], %34 {strides = array<i32>} : memref<1x1x16xf32, #tpu.memory_space<vmem>>, vector<1x1x16xf32>,
    %35 = arith.mulf %26, %26 : vector<256x16xf32>
    %cst_21 = arith.constant dense<0.000000e+00> : vector<16xf32>
    %36 = vector.multi_reduction <add>, %35, %cst_21 [0] : vector<256x16xf32> to vector<16xf32>
    %37 = vector.shape_cast %36 : vector<16xf32> to vector<1x16xf32>
    %c0_22 = arith.constant 0 : index
    %c0_23 = arith.constant 0 : index
    %c0_24 = arith.constant 0 : index
    %38 = vector.load %arg5[%c0_22, %c0_23, %c0_24] : memref<1x1x16xf32, #tpu.memory_space<vmem>>, vector<1x1x16xf32>
    %39 = vector.shape_cast %38 : vector<1x1x16xf32> to vector<1x16xf32>
    %40 = vector.shape_cast %37 : vector<1x16xf32> to vector<1x1x16xf32>
    tpu.vector_store %arg5[%c0_22, %c0_23, %c0_24], %40 {strides = array<i32>} : memref<1x1x16xf32, #tpu.memory_space<vmem>>, vector<1x1x16xf32>,
    return
  }
  func.func @transform_0(%arg0: i32) -> (i32, i32, i32, i32) {
    %c0_i32 = arith.constant 0 : i32
    %c0_i32_0 = arith.constant 0 : i32
    %c0_i32_1 = arith.constant 0 : i32
    %c0_i32_2 = arith.constant 0 : i32
    return %arg0, %c0_i32, %c0_i32_0, %c0_i32_1 : i32, i32, i32, i32
  }
  func.func @transform_1(%arg0: i32) -> (i32, i32) {
    %c0_i32 = arith.constant 0 : i32
    %c0_i32_0 = arith.constant 0 : i32
    %c0_i32_1 = arith.constant 0 : i32
    return %c0_i32, %c0_i32_0 : i32, i32
  }
  func.func @transform_2(%arg0: i32) -> (i32, i32, i32) {
    %c0_i32 = arith.constant 0 : i32
    %c0_i32_0 = arith.constant 0 : i32
    %c0_i32_1 = arith.constant 0 : i32
    return %arg0, %c0_i32, %c0_i32_0 : i32, i32, i32
  }
  func.func @transform_3(%arg0: i32) -> (i32, i32, i32) {
    %c0_i32 = arith.constant 0 : i32
    %c0_i32_0 = arith.constant 0 : i32
    %c0_i32_1 = arith.constant 0 : i32
    return %arg0, %c0_i32, %c0_i32_0 : i32, i32, i32
  }
  func.func @transform_4(%arg0: i32) -> (i32, i32, i32) {
    %c0_i32 = arith.constant 0 : i32
    %c0_i32_0 = arith.constant 0 : i32
    %c0_i32_1 = arith.constant 0 : i32
    return %arg0, %c0_i32, %c0_i32_0 : i32, i32, i32
  }
}

</mosaic_0001>

<llo_original>
// kernel: tpu_custom_call.1
$region0: #{tpu_custom_call.1}
  #allocation0 [shape = 'u32[]', space=smem, size = 0x4, offset = 0x4, fixed_abs, tag = 'smem constant byte address 0x4 - core index']
  #allocation1 [shape = 'u32[144,128]{1,0:T(1,128)}', space=vmem, size = 0x12000, scoped, tag = 'internal scratch']
  #allocation2 [shape = 'f32[18,18,16]{2,1,0:T(8,128)}', space=vmem, size = 0x36000, scoped, tag = 'scratch operand']
  %s0 = inlined_call_operand.hbm [shape: f32[2,16,16,16], index: 0, kind: input, shape index: {}]
  %s1 = inlined_call_operand.vmem [shape: f32[144,16], index: 1, kind: input, shape index: {}]
  %s2 = inlined_call_operand.vmem [shape: f32[2,256,16], index: 2, kind: output, shape index: {0}]
  %s3 = inlined_call_operand.hbm [shape: f32[2,1,16], index: 3, kind: output, shape index: {1}]
  %s4 = inlined_call_operand.hbm [shape: f32[2,1,16], index: 4, kind: output, shape index: {2}]
  %5 = xla_tuple %s2, %s3, %s4
  %s6 = sld [smem:[#allocation0]]
  $region61: #{tpu_custom_call.1} parent=0
    _
  %s8 = ssub.s32 1, %s6
  %s9 = scalar_select 0, %s8, %s6
  $region1: #{tpu_custom_call.1} parent=0
    #allocation3 [shape = 'u8[262144]{0}', space=vmem, size = 0x40000, scoped, tag = 'input window, operand 0']
    #allocation4 [shape = 's32[2]{0}', space=sflag, size = 0x8, scoped, tag = 'scoped memory for tpu_custom_call.1']
    #allocation5 [shape = 's32[2]{0}', space=sflag, size = 0x8, scoped, tag = 'scoped memory for tpu_custom_call.1']
    #allocation6 [shape = 'u8[1024]{0}', space=vmem, size = 0x400, scoped, tag = 'output window, operand 1']
    #allocation7 [shape = 'u8[1024]{0}', space=vmem, size = 0x400, scoped, tag = 'output window, operand 2']
    #allocation8 [shape = 's32[2]{0}', space=sflag, size = 0x8, scoped, tag = 'scoped memory for tpu_custom_call.1']
    %10 = vsyncpa [#allocation4], 0
    %s11 = scalar_lea.sflag [#allocation4], 1
    %12 = vsyncpa %s11, 0
    %13 = vsyncpa [#allocation5], 0
    %s14 = scalar_lea.sflag [#allocation5], 1
    %15 = vsyncpa %s14, 0
    %16 = vsyncpa [#allocation8], 0
    %s17 = scalar_lea.sflag [#allocation8], 1
    %18 = vsyncpa %s17, 0
    loop: start=0, step=1, limit=4
    $region2: #{tpu_custom_call.1} parent=1 // loop_pre_header
      _
    $region3: #{tpu_custom_call.1} parent=1 // loop_header
      %s20 = sphi 0, %s24
      %p21 = scmp.ge.s32.totalorder %s20, 4
      %s30 = sphi 0, %s32
      %s33 = sphi 0, %s30
      %s34 = sphi 0, %s33
      %s50 = sphi 0, %s34
      %s54 = sphi 0, %s54
      %s56 = sphi 0, %s54
      %s57 = sphi 0, %s56
      %s71 = sphi 0, %s57
      %s77 = sphi 0, %s79
      %s80 = sphi 0, %s77
      %s81 = sphi 0, %s80
      %s97 = sphi 0, %s81
      %s103 = sphi 0, %s105
      %s106 = sphi 0, %s103
      %s107 = sphi 0, %s106
      %s123 = sphi 0, %s107
      %s129 = sphi 0, %s131
      %s132 = sphi 0, %s129
      %s133 = sphi 0, %s132
      %s149 = sphi 0, %s133
    $region4: #{tpu_custom_call.1} parent=1 // loop_header_branch
      %23 = sbr.rel (%p21) target = $region8
    $region5: #{tpu_custom_call.1} parent=1 // loop_body
      %s25 = ssub.s32 %s20, 1
      %s26 = ssub.s32 %s20, 2
      %s27 = sadd.s32 %s20, 1
      %s28 = ssub.s32 %s20, %s27
      %p29 = scmp.eq.s32.totalorder %s28, 0
      %s31 = sadd.s32 %s30, 1
      %s32 = scalar_select %p29, %s30, %s31
      %p35 = pneg %p29
      %p36 = scmp.eq.s32.totalorder %s20, 1
      %p37 = por %p35, %p36
      %p38 = scmp.ne.s32.totalorder %s30, %s33
      %p39 = scmp.eq.s32.totalorder %s20, 0
      %p40 = por %p38, %p39
      %p41 = scmp.ne.s32.totalorder %s30, %s33
      %p42 = scmp.eq.s32.totalorder %s25, 1
      %p43 = por %p41, %p42
      %p44 = scmp.ne.s32.totalorder %s33, %s34
      %p45 = scmp.eq.s32.totalorder %s25, 0
      %p46 = por %p44, %p45
      %p47 = scmp.ne.s32.totalorder %s33, %s34
      %p48 = scmp.eq.s32.totalorder %s26, 1
      %p49 = por %p47, %p48
      %p51 = scmp.ne.s32.totalorder %s34, %s50
      %p52 = scmp.eq.s32.totalorder %s26, 0
      %p53 = por %p51, %p52
      %s55 = sadd.s32 %s54, 1
      %p58 = scmp.eq.s32.totalorder %s20, 1
      %p59 = scmp.ne.s32.totalorder %s54, %s56
      %p60 = scmp.eq.s32.totalorder %s20, 0
      %p61 = por %p59, %p60
      %p62 = scmp.ne.s32.totalorder %s54, %s56
      %p63 = scmp.eq.s32.totalorder %s25, 1
      %p64 = por %p62, %p63
      %p65 = scmp.ne.s32.totalorder %s56, %s57
      %p66 = scmp.eq.s32.totalorder %s25, 0
      %p67 = por %p65, %p66
      %p68 = scmp.ne.s32.totalorder %s56, %s57
      %p69 = scmp.eq.s32.totalorder %s26, 1
      %p70 = por %p68, %p69
      %p72 = scmp.ne.s32.totalorder %s57, %s71
      %p73 = scmp.eq.s32.totalorder %s26, 0
      %p74 = por %p72, %p73
      %s75 = ssub.s32 %s20, %s27
      %p76 = scmp.eq.s32.totalorder %s75, 0
      %s78 = sadd.s32 %s77, 1
      %s79 = scalar_select %p76, %s77, %s78
      %p82 = pneg %p76
      %p83 = scmp.eq.s32.totalorder %s20, 1
      %p84 = por %p82, %p83
      %p85 = scmp.ne.s32.totalorder %s77, %s80
      %p86 = scmp.eq.s32.totalorder %s20, 0
      %p87 = por %p85, %p86
      %p88 = scmp.ne.s32.totalorder %s77, %s80
      %p89 = scmp.eq.s32.totalorder %s25, 1
      %p90 = por %p88, %p89
      %p91 = scmp.ne.s32.totalorder %s80, %s81
      %p92 = scmp.eq.s32.totalorder %s25, 0
      %p93 = por %p91, %p92
      %p94 = scmp.ne.s32.totalorder %s80, %s81
      %p95 = scmp.eq.s32.totalorder %s26, 1
      %p96 = por %p94, %p95
      %p98 = scmp.ne.s32.totalorder %s81, %s97
      %p99 = scmp.eq.s32.totalorder %s26, 0
      %p100 = por %p98, %p99
      %s101 = ssub.s32 %s20, %s27
      %p102 = scmp.eq.s32.totalorder %s101, 0
      %s104 = sadd.s32 %s103, 1
      %s105 = scalar_select %p102, %s103, %s104
      %p108 = pneg %p102
      %p109 = scmp.eq.s32.totalorder %s20, 1
      %p110 = por %p108, %p109
      %p111 = scmp.ne.s32.totalorder %s103, %s106
      %p112 = scmp.eq.s32.totalorder %s20, 0
      %p113 = por %p111, %p112
      %p114 = scmp.ne.s32.totalorder %s103, %s106
      %p115 = scmp.eq.s32.totalorder %s25, 1
      %p116 = por %p114, %p115
      %p117 = scmp.ne.s32.totalorder %s106, %s107
      %p118 = scmp.eq.s32.totalorder %s25, 0
      %p119 = por %p117, %p118
      %p120 = scmp.ne.s32.totalorder %s106, %s107
      %p121 = scmp.eq.s32.totalorder %s26, 1
      %p122 = por %p120, %p121
      %p124 = scmp.ne.s32.totalorder %s107, %s123
      %p125 = scmp.eq.s32.totalorder %s26, 0
      %p126 = por %p124, %p125
      %s127 = ssub.s32 %s20, %s27
      %p128 = scmp.eq.s32.totalorder %s127, 0
      %s130 = sadd.s32 %s129, 1
      %s131 = scalar_select %p128, %s129, %s130
      %p134 = pneg %p128
      %p135 = scmp.eq.s32.totalorder %s20, 1
      %p136 = por %p134, %p135
      %p137 = scmp.ne.s32.totalorder %s129, %s132
      %p138 = scmp.eq.s32.totalorder %s20, 0
      %p139 = por %p137, %p138
      %p140 = scmp.ne.s32.totalorder %s129, %s132
      %p141 = scmp.eq.s32.totalorder %s25, 1
      %p142 = por %p140, %p141
      %p143 = scmp.ne.s32.totalorder %s132, %s133
      %p144 = scmp.eq.s32.totalorder %s25, 0
      %p145 = por %p143, %p144
      %p146 = scmp.ne.s32.totalorder %s132, %s133
      %p147 = scmp.eq.s32.totalorder %s26, 1
      %p148 = por %p146, %p147
      %p150 = scmp.ne.s32.totalorder %s133, %s149
      %p151 = scmp.eq.s32.totalorder %s26, 0
      %p152 = por %p150, %p151
      %p153 = scmp.le.s32.totalorder 1, %s20
      %p154 = scmp.lt.s32.totalorder %s20, 3
      %p155 = pnand %p153, %p154
      %p156 = pneg %p155
      // Predicated region
      $region9: #{tpu_custom_call.1} parent=5 // pred_check
        _
      $region10: #{tpu_custom_call.1} parent=5 // pred_check_branch
        %158 = sbr.rel (%p155) target = $region12
      $region11: #{tpu_custom_call.1} parent=5 // pred_region
        %s159 = ssub.s32 %s20, 1
        // Predicated region
        $region13: #{tpu_custom_call.1} parent=11 // pred_check
          %p160 = pneg %p67
        $region14: #{tpu_custom_call.1} parent=11 // pred_check_branch
          %162 = sbr.rel (%p160) target = $region16
        $region15: #{tpu_custom_call.1} parent=11 // pred_region
          _
        $region16: #{tpu_custom_call.1} parent=11 // pred_fallthru
          _
      $region12: #{tpu_custom_call.1} parent=5 // pred_fallthru
        _
      %p163 = scmp.lt.s32.totalorder %s20, 2
      // Predicated region
      $region17: #{tpu_custom_call.1} parent=5 // pred_check
        %p164 = pneg %p163
      $region18: #{tpu_custom_call.1} parent=5 // pred_check_branch
        %166 = sbr.rel (%p164) target = $region20
      $region19: #{tpu_custom_call.1} parent=5 // pred_region
        // Predicated region
        $region21: #{tpu_custom_call.1} parent=19 // pred_check
          %p167 = pneg %p40
        $region22: #{tpu_custom_call.1} parent=19 // pred_check_branch
          %169 = sbr.rel (%p167) target = $region24
        $region23: #{tpu_custom_call.1} parent=19 // pred_region
          %s170 = sand.u32 %s30, 1
          %s171 = scalar_lea.sflag [#allocation4], %s170
          %s172 = sand.u32 %s30, 1
          %s173 = smul.addr %s172, 256
          %s174 = scalar_lea.vmem [#allocation3], %s173
          %s176 = ssub.s32 4096, 4096
          %177 = vsyncadd %s171, %s176
          %s178 = smul.addr %s20, 32
          %s179 = smul.addr %s178, 128
          %s180 = scalar_lea.hbm %s0, %s179
          %s181 = sshll.u32 %s174, 4
          %s182 = int_to_ptr.vmem [resolvable:$true] %s181
          %187 = dma.hbm_to_vmem [thread:$0]  %s180, 4096, %s182, %s171, 128, 128, 8
        $region24: #{tpu_custom_call.1} parent=19 // pred_fallthru
          _
      $region20: #{tpu_custom_call.1} parent=5 // pred_fallthru
        _
      %p188 = scmp.le.s32.totalorder 1, %s20
      %p189 = scmp.lt.s32.totalorder %s20, 3
      %p190 = pnand %p188, %p189
      %p191 = pneg %p190
      // Predicated region
      $region25: #{tpu_custom_call.1} parent=5 // pred_check
        _
      $region26: #{tpu_custom_call.1} parent=5 // pred_check_branch
        %193 = sbr.rel (%p190) target = $region28
      $region27: #{tpu_custom_call.1} parent=5 // pred_region
        %s194 = ssub.s32 %s20, 1
        %s195 = sand.u32 %s33, 1
        %s196 = scalar_lea.sflag [#allocation4], %s195
        %s197 = sand.u32 %s33, 1
        %s198 = smul.addr %s197, 256
        %s199 = scalar_lea.vmem [#allocation3], %s198
        // Predicated region
        $region29: #{tpu_custom_call.1} parent=27 // pred_check
          %p200 = pneg %p46
        $region30: #{tpu_custom_call.1} parent=27 // pred_check_branch
          %202 = sbr.rel (%p200) target = $region32
        $region31: #{tpu_custom_call.1} parent=27 // pred_region
          %203 = dma.done %s196, 4096
        $region32: #{tpu_custom_call.1} parent=27 // pred_fallthru
          _
        %s204 = sand.u32 %s33, 1
        %s205 = scalar_lea.sflag [#allocation4], %s204
        %s206 = sand.u32 %s33, 1
        %s207 = smul.addr %s206, 256
        %s208 = scalar_lea.vmem [#allocation3], %s207
        %p209 = pneg %p46
        %p210 = pneg %p43
        %p211 = pneg %p67
        %p212 = pneg %p64
        %p213 = pneg %p93
        %p214 = pneg %p90
        %p215 = scmp.lt.s32.totalorder %s25, 1
        %s216 = scalar_select %p215, %s25, 1
        %s217 = smul.addr %s216, 32
        %s218 = smul.addr %s217, 8
        %s219 = scalar_lea.vmem %s2, %s218
        %p220 = pneg %p119
        %p221 = pneg %p116
        %s222 = sand.u32 %s106, 1
        %s223 = scalar_lea.sflag [#allocation5], %s222
        %s224 = sand.u32 %s106, 1
        %s225 = scalar_lea.vmem [#allocation6], %s224
        %p226 = pneg %p145
        %p227 = pneg %p142
        %s228 = sand.u32 %s132, 1
        %s229 = scalar_lea.sflag [#allocation8], %s228
        %s230 = sand.u32 %s132, 1
        %s231 = scalar_lea.vmem [#allocation7], %s230
        %p232 = scmp.lt.s32.totalorder %s25, 1
        %s233 = scalar_select %p232, %s25, 1
        %s234 = smul.addr %s233, 32
        %s235 = smul.addr %s234, 8
        %s236 = scalar_lea.vmem %s2, %s235
        %vm237 = vcmask 130048
        %238 = vst.msk [vmem:[#allocation2] sm:$0xff] %vm237, 0.0
        %239 = vst.msk [vmem:[#allocation2 + $0x8] sm:$0xff] %vm237, 0.0
        %vm240 = vcmask 123904
        %241 = vst.msk [vmem:[#allocation2 + $0x10] sm:$0x3] %vm240, 0.0
        %242 = vst.msk [vmem:[#allocation2 + $0x18] sm:$0xff] %vm237, 0.0
        %243 = vst.msk [vmem:[#allocation2 + $0x20] sm:$0xff] %vm237, 0.0
        %244 = vst.msk [vmem:[#allocation2 + $0x28] sm:$0x3] %vm240, 0.0
        %245 = vst.msk [vmem:[#allocation2 + $0x30] sm:$0xff] %vm237, 0.0
        %246 = vst.msk [vmem:[#allocation2 + $0x38] sm:$0xff] %vm237, 0.0
        %247 = vst.msk [vmem:[#allocation2 + $0x40] sm:$0x3] %vm240, 0.0
        %248 = vst.msk [vmem:[#allocation2 + $0x48] sm:$0xff] %vm237, 0.0
        %249 = vst.msk [vmem:[#allocation2 + $0x50] sm:$0xff] %vm237, 0.0
        %250 = vst.msk [vmem:[#allocation2 + $0x58] sm:$0x3] %vm240, 0.0
        %251 = vst.msk [vmem:[#allocation2 + $0x60] sm:$0xff] %vm237, 0.0
        %252 = vst.msk [vmem:[#allocation2 + $0x68] sm:$0xff] %vm237, 0.0
        %253 = vst.msk [vmem:[#allocation2 + $0x70] sm:$0x3] %vm240, 0.0
        %254 = vst.msk [vmem:[#allocation2 + $0x78] sm:$0xff] %vm237, 0.0
        %255 = vst.msk [vmem:[#allocation2 + $0x80] sm:$0xff] %vm237, 0.0
        %256 = vst.msk [vmem:[#allocation2 + $0x88] sm:$0x3] %vm240, 0.0
        %257 = vst.msk [vmem:[#allocation2 + $0x90] sm:$0xff] %vm237, 0.0
        %258 = vst.msk [vmem:[#allocation2 + $0x98] sm:$0xff] %vm237, 0.0
        %259 = vst.msk [vmem:[#allocation2 + $0xa0] sm:$0x3] %vm240, 0.0
        %260 = vst.msk [vmem:[#allocation2 + $0xa8] sm:$0xff] %vm237, 0.0
        %261 = vst.msk [vmem:[#allocation2 + $0xb0] sm:$0xff] %vm237, 0.0
        %262 = vst.msk [vmem:[#allocation2 + $0xb8] sm:$0x3] %vm240, 0.0
        %263 = vst.msk [vmem:[#allocation2 + $0xc0] sm:$0xff] %vm237, 0.0
        %264 = vst.msk [vmem:[#allocation2 + $0xc8] sm:$0xff] %vm237, 0.0
        %265 = vst.msk [vmem:[#allocation2 + $0xd0] sm:$0x3] %vm240, 0.0
        %266 = vst.msk [vmem:[#allocation2 + $0xd8] sm:$0xff] %vm237, 0.0
        %267 = vst.msk [vmem:[#allocation2 + $0xe0] sm:$0xff] %vm237, 0.0
        %268 = vst.msk [vmem:[#allocation2 + $0xe8] sm:$0x3] %vm240, 0.0
        %269 = vst.msk [vmem:[#allocation2 + $0xf0] sm:$0xff] %vm237, 0.0
        %270 = vst.msk [vmem:[#allocation2 + $0xf8] sm:$0xff] %vm237, 0.0
        %271 = vst.msk [vmem:[#allocation2 + $0x100] sm:$0x3] %vm240, 0.0
        %272 = vst.msk [vmem:[#allocation2 + $0x108] sm:$0xff] %vm237, 0.0
        %273 = vst.msk [vmem:[#allocation2 + $0x110] sm:$0xff] %vm237, 0.0
        %274 = vst.msk [vmem:[#allocation2 + $0x118] sm:$0x3] %vm240, 0.0
        %275 = vst.msk [vmem:[#allocation2 + $0x120] sm:$0xff] %vm237, 0.0
        %276 = vst.msk [vmem:[#allocation2 + $0x128] sm:$0xff] %vm237, 0.0
        %277 = vst.msk [vmem:[#allocation2 + $0x130] sm:$0x3] %vm240, 0.0
        %278 = vst.msk [vmem:[#allocation2 + $0x138] sm:$0xff] %vm237, 0.0
        %279 = vst.msk [vmem:[#allocation2 + $0x140] sm:$0xff] %vm237, 0.0
        %280 = vst.msk [vmem:[#allocation2 + $0x148] sm:$0x3] %vm240, 0.0
        %281 = vst.msk [vmem:[#allocation2 + $0x150] sm:$0xff] %vm237, 0.0
        %282 = vst.msk [vmem:[#allocation2 + $0x158] sm:$0xff] %vm237, 0.0
        %283 = vst.msk [vmem:[#allocation2 + $0x160] sm:$0x3] %vm240, 0.0
        %284 = vst.msk [vmem:[#allocation2 + $0x168] sm:$0xff] %vm237, 0.0
        %285 = vst.msk [vmem:[#allocation2 + $0x170] sm:$0xff] %vm237, 0.0
        %286 = vst.msk [vmem:[#allocation2 + $0x178] sm:$0x3] %vm240, 0.0
        %287 = vst.msk [vmem:[#allocation2 + $0x180] sm:$0xff] %vm237, 0.0
        %288 = vst.msk [vmem:[#allocation2 + $0x188] sm:$0xff] %vm237, 0.0
        %289 = vst.msk [vmem:[#allocation2 + $0x190] sm:$0x3] %vm240, 0.0
        %290 = vst.msk [vmem:[#allocation2 + $0x198] sm:$0xff] %vm237, 0.0
        %291 = vst.msk [vmem:[#allocation2 + $0x1a0] sm:$0xff] %vm237, 0.0
        %292 = vst.msk [vmem:[#allocation2 + $0x1a8] sm:$0x3] %vm240, 0.0
        %v293 = vld [vmem:[%s199] sm:$0xff]
        %v294 = vld [vmem:[%s199 + $0x8] sm:$0xff]
        %v295 = vld [vmem:[%s199 + $0x10] sm:$0xff]
        %v296 = vld [vmem:[%s199 + $0x18] sm:$0xff]
        %v297 = vld [vmem:[%s199 + $0x20] sm:$0xff]
        %v298 = vld [vmem:[%s199 + $0x28] sm:$0xff]
        %v299 = vld [vmem:[%s199 + $0x30] sm:$0xff]
        %v300 = vld [vmem:[%s199 + $0x38] sm:$0xff]
        %v301 = vld [vmem:[%s199 + $0x40] sm:$0xff]
        %v302 = vld [vmem:[%s199 + $0x48] sm:$0xff]
        %v303 = vld [vmem:[%s199 + $0x50] sm:$0xff]
        %v304 = vld [vmem:[%s199 + $0x58] sm:$0xff]
        %v305 = vld [vmem:[%s199 + $0x60] sm:$0xff]
        %v306 = vld [vmem:[%s199 + $0x68] sm:$0xff]
        %v307 = vld [vmem:[%s199 + $0x70] sm:$0xff]
        %v308 = vld [vmem:[%s199 + $0x78] sm:$0xff]
        %v309 = vld [vmem:[%s199 + $0x80] sm:$0xff]
        %v310 = vld [vmem:[%s199 + $0x88] sm:$0xff]
        %v311 = vld [vmem:[%s199 + $0x90] sm:$0xff]
        %v312 = vld [vmem:[%s199 + $0x98] sm:$0xff]
        %v313 = vld [vmem:[%s199 + $0xa0] sm:$0xff]
        %v314 = vld [vmem:[%s199 + $0xa8] sm:$0xff]
        %v315 = vld [vmem:[%s199 + $0xb0] sm:$0xff]
        %v316 = vld [vmem:[%s199 + $0xb8] sm:$0xff]
        %v317 = vld [vmem:[%s199 + $0xc0] sm:$0xff]
        %v318 = vld [vmem:[%s199 + $0xc8] sm:$0xff]
        %v319 = vld [vmem:[%s199 + $0xd0] sm:$0xff]
        %v320 = vld [vmem:[%s199 + $0xd8] sm:$0xff]
        %v321 = vld [vmem:[%s199 + $0xe0] sm:$0xff]
        %v322 = vld [vmem:[%s199 + $0xe8] sm:$0xff]
        %v323 = vld [vmem:[%s199 + $0xf0] sm:$0xff]
        %v324 = vld [vmem:[%s199 + $0xf8] sm:$0xff]
        %s325 = scalar_lea.vmem [#allocation2], 24
        %326 = vst.msk [vmem:[%s325 + $0x1] sm:$0xff] %vm237, %v293
        %327 = vst.msk [vmem:[%s325 + $0x9] sm:$0xff] %vm237, %v294
        %328 = vst.msk [vmem:[%s325 + $0x19] sm:$0xff] %vm237, %v295
        %329 = vst.msk [vmem:[%s325 + $0x21] sm:$0xff] %vm237, %v296
        %330 = vst.msk [vmem:[%s325 + $0x31] sm:$0xff] %vm237, %v297
        %331 = vst.msk [vmem:[%s325 + $0x39] sm:$0xff] %vm237, %v298
        %332 = vst.msk [vmem:[%s325 + $0x49] sm:$0xff] %vm237, %v299
        %333 = vst.msk [vmem:[%s325 + $0x51] sm:$0xff] %vm237, %v300
        %334 = vst.msk [vmem:[%s325 + $0x61] sm:$0xff] %vm237, %v301
        %335 = vst.msk [vmem:[%s325 + $0x69] sm:$0xff] %vm237, %v302
        %336 = vst.msk [vmem:[%s325 + $0x79] sm:$0xff] %vm237, %v303
        %337 = vst.msk [vmem:[%s325 + $0x81] sm:$0xff] %vm237, %v304
        %338 = vst.msk [vmem:[%s325 + $0x91] sm:$0xff] %vm237, %v305
        %339 = vst.msk [vmem:[%s325 + $0x99] sm:$0xff] %vm237, %v306
        %340 = vst.msk [vmem:[%s325 + $0xa9] sm:$0xff] %vm237, %v307
        %341 = vst.msk [vmem:[%s325 + $0xb1] sm:$0xff] %vm237, %v308
        %342 = vst.msk [vmem:[%s325 + $0xc1] sm:$0xff] %vm237, %v309
        %343 = vst.msk [vmem:[%s325 + $0xc9] sm:$0xff] %vm237, %v310
        %344 = vst.msk [vmem:[%s325 + $0xd9] sm:$0xff] %vm237, %v311
        %345 = vst.msk [vmem:[%s325 + $0xe1] sm:$0xff] %vm237, %v312
        %346 = vst.msk [vmem:[%s325 + $0xf1] sm:$0xff] %vm237, %v313
        %347 = vst.msk [vmem:[%s325 + $0xf9] sm:$0xff] %vm237, %v314
        %348 = vst.msk [vmem:[%s325 + $0x109] sm:$0xff] %vm237, %v315
        %349 = vst.msk [vmem:[%s325 + $0x111] sm:$0xff] %vm237, %v316
        %350 = vst.msk [vmem:[%s325 + $0x121] sm:$0xff] %vm237, %v317
        %351 = vst.msk [vmem:[%s325 + $0x129] sm:$0xff] %vm237, %v318
        %352 = vst.msk [vmem:[%s325 + $0x139] sm:$0xff] %vm237, %v319
        %353 = vst.msk [vmem:[%s325 + $0x141] sm:$0xff] %vm237, %v320
        %354 = vst.msk [vmem:[%s325 + $0x151] sm:$0xff] %vm237, %v321
        %355 = vst.msk [vmem:[%s325 + $0x159] sm:$0xff] %vm237, %v322
        %356 = vst.msk [vmem:[%s325 + $0x169] sm:$0xff] %vm237, %v323
        %357 = vst.msk [vmem:[%s325 + $0x171] sm:$0xff] %vm237, %v324
        %v358 = vld [vmem:[#allocation2] sm:$0xff]
        %v359 = vld [vmem:[#allocation2 + $0x8] sm:$0xff]
        %v360 = vld [vmem:[#allocation2 + $0x10] sm:$0x3]
        %v361 = vld [vmem:[#allocation2 + $0x18] sm:$0xff]
        %v362 = vld [vmem:[#allocation2 + $0x20] sm:$0xff]
        %v363 = vld [vmem:[#allocation2 + $0x28] sm:$0x3]
        %v364 = vld [vmem:[#allocation2 + $0x30] sm:$0xff]
        %v365 = vld [vmem:[#allocation2 + $0x38] sm:$0xff]
        %v366 = vld [vmem:[#allocation2 + $0x40] sm:$0x3]
        %v367 = vld [vmem:[#allocation2 + $0x48] sm:$0xff]
        %v368 = vld [vmem:[#allocation2 + $0x50] sm:$0xff]
        %v369 = vld [vmem:[#allocation2 + $0x58] sm:$0x3]
        %v370 = vld [vmem:[#allocation2 + $0x60] sm:$0xff]
        %v371 = vld [vmem:[#allocation2 + $0x68] sm:$0xff]
        %v372 = vld [vmem:[#allocation2 + $0x70] sm:$0x3]
        %v373 = vld [vmem:[#allocation2 + $0x78] sm:$0xff]
        %v374 = vld [vmem:[#allocation2 + $0x80] sm:$0xff]
        %v375 = vld [vmem:[#allocation2 + $0x88] sm:$0x3]
        %v376 = vld [vmem:[#allocation2 + $0x90] sm:$0xff]
        %v377 = vld [vmem:[#allocation2 + $0x98] sm:$0xff]
        %v378 = vld [vmem:[#allocation2 + $0xa0] sm:$0x3]
        %v379 = vld [vmem:[#allocation2 + $0xa8] sm:$0xff]
        %v380 = vld [vmem:[#allocation2 + $0xb0] sm:$0xff]
        %v381 = vld [vmem:[#allocation2 + $0xb8] sm:$0x3]
        %v382 = vld [vmem:[#allocation2 + $0xc0] sm:$0xff]
        %v383 = vld [vmem:[#allocation2 + $0xc8] sm:$0xff]
        %v384 = vld [vmem:[#allocation2 + $0xd0] sm:$0x3]
        %v385 = vld [vmem:[#allocation2 + $0xd8] sm:$0xff]
        %v386 = vld [vmem:[#allocation2 + $0xe0] sm:$0xff]
        %v387 = vld [vmem:[#allocation2 + $0xe8] sm:$0x3]
        %v388 = vld [vmem:[#allocation2 + $0xf0] sm:$0xff]
        %v389 = vld [vmem:[#allocation2 + $0xf8] sm:$0xff]
        %v390 = vld [vmem:[#allocation2 + $0x100] sm:$0x3]
        %v391 = vld [vmem:[#allocation2 + $0x108] sm:$0xff]
        %v392 = vld [vmem:[#allocation2 + $0x110] sm:$0xff]
        %v393 = vld [vmem:[#allocation2 + $0x118] sm:$0x3]
        %v394 = vld [vmem:[#allocation2 + $0x120] sm:$0xff]
        %v395 = vld [vmem:[#allocation2 + $0x128] sm:$0xff]
        %v396 = vld [vmem:[#allocation2 + $0x130] sm:$0x3]
        %v397 = vld [vmem:[#allocation2 + $0x138] sm:$0xff]
        %v398 = vld [vmem:[#allocation2 + $0x140] sm:$0xff]
        %v399 = vld [vmem:[#allocation2 + $0x148] sm:$0x3]
        %v400 = vld [vmem:[#allocation2 + $0x150] sm:$0xff]
        %v401 = vld [vmem:[#allocation2 + $0x158] sm:$0xff]
        %v402 = vld [vmem:[#allocation2 + $0x160] sm:$0x3]
        %v403 = vld [vmem:[#allocation2 + $0x168] sm:$0xff]
        %v404 = vld [vmem:[#allocation2 + $0x170] sm:$0xff]
        %v405 = vld [vmem:[#allocation2 + $0x178] sm:$0x3]
        %v406 = vld [vmem:[#allocation2 + $0x180] sm:$0xff]
        %v407 = vld [vmem:[#allocation2 + $0x188] sm:$0xff]
        %v408 = vld [vmem:[#allocation2 + $0x190] sm:$0x3]
        %v409 = vld [vmem:[#allocation2 + $0x198] sm:$0xff]
        %v410 = vld [vmem:[#allocation2 + $0x1a0] sm:$0xff]
        %v411 = vld [vmem:[#allocation2 + $0x1a8] sm:$0x3]
        %vm460 = vcmask 1046528
        %v461 = vrot.slane %v358, 1
        %v462 = vrot.slane %v359, 1
        %v463 = vsel %vm460, %v461, %v462
        %v464 = vrot.slane %v360, 1
        %v465 = vsel %vm460, %v462, %v464
        %v466 = vrot.slane %v361, 1
        %v467 = vrot.slane %v362, 1
        %v468 = vsel %vm460, %v466, %v467
        %v469 = vrot.slane %v363, 1
        %v470 = vsel %vm460, %v467, %v469
        %v471 = vrot.slane %v364, 1
        %v472 = vrot.slane %v365, 1
        %v473 = vsel %vm460, %v471, %v472
        %v474 = vrot.slane %v366, 1
        %v475 = vsel %vm460, %v472, %v474
        %v476 = vrot.slane %v367, 1
        %v477 = vrot.slane %v368, 1
        %v478 = vsel %vm460, %v476, %v477
        %v479 = vrot.slane %v369, 1
        %v480 = vsel %vm460, %v477, %v479
        %v481 = vrot.slane %v370, 1
        %v482 = vrot.slane %v371, 1
        %v483 = vsel %vm460, %v481, %v482
        %v484 = vrot.slane %v372, 1
        %v485 = vsel %vm460, %v482, %v484
        %v486 = vrot.slane %v373, 1
        %v487 = vrot.slane %v374, 1
        %v488 = vsel %vm460, %v486, %v487
        %v489 = vrot.slane %v375, 1
        %v490 = vsel %vm460, %v487, %v489
        %v491 = vrot.slane %v376, 1
        %v492 = vrot.slane %v377, 1
        %v493 = vsel %vm460, %v491, %v492
        %v494 = vrot.slane %v378, 1
        %v495 = vsel %vm460, %v492, %v494
        %v496 = vrot.slane %v379, 1
        %v497 = vrot.slane %v380, 1
        %v498 = vsel %vm460, %v496, %v497
        %v499 = vrot.slane %v381, 1
        %v500 = vsel %vm460, %v497, %v499
        %v501 = vrot.slane %v382, 1
        %v502 = vrot.slane %v383, 1
        %v503 = vsel %vm460, %v501, %v502
        %v504 = vrot.slane %v384, 1
        %v505 = vsel %vm460, %v502, %v504
        %v506 = vrot.slane %v385, 1
        %v507 = vrot.slane %v386, 1
        %v508 = vsel %vm460, %v506, %v507
        %v509 = vrot.slane %v387, 1
        %v510 = vsel %vm460, %v507, %v509
        %v511 = vrot.slane %v388, 1
        %v512 = vrot.slane %v389, 1
        %v513 = vsel %vm460, %v511, %v512
        %v514 = vrot.slane %v390, 1
        %v515 = vsel %vm460, %v512, %v514
        %v516 = vrot.slane %v391, 1
        %v517 = vrot.slane %v392, 1
        %v518 = vsel %vm460, %v516, %v517
        %v519 = vrot.slane %v393, 1
        %v520 = vsel %vm460, %v517, %v519
        %v521 = vrot.slane %v394, 1
        %v522 = vrot.slane %v395, 1
        %v523 = vsel %vm460, %v521, %v522
        %v524 = vrot.slane %v396, 1
        %v525 = vsel %vm460, %v522, %v524
        %v526 = vrot.slane %v397, 1
        %v527 = vrot.slane %v398, 1
        %v528 = vsel %vm460, %v526, %v527
        %v529 = vrot.slane %v399, 1
        %v530 = vsel %vm460, %v527, %v529
        %v531 = vrot.slane %v400, 1
        %v532 = vrot.slane %v401, 1
        %v533 = vsel %vm460, %v531, %v532
        %v534 = vrot.slane %v402, 1
        %v535 = vsel %vm460, %v532, %v534
        %v536 = vrot.slane %v403, 1
        %v537 = vrot.slane %v404, 1
        %v538 = vsel %vm460, %v536, %v537
        %v539 = vrot.slane %v405, 1
        %v540 = vsel %vm460, %v537, %v539
        %vm541 = vcmask 1045504
        %v542 = vrot.slane %v358, 2
        %v543 = vrot.slane %v359, 2
        %v544 = vsel %vm541, %v542, %v543
        %v545 = vrot.slane %v360, 2
        %v546 = vsel %vm541, %v543, %v545
        %v547 = vrot.slane %v361, 2
        %v548 = vrot.slane %v362, 2
        %v549 = vsel %vm541, %v547, %v548
        %v550 = vrot.slane %v363, 2
        %v551 = vsel %vm541, %v548, %v550
        %v552 = vrot.slane %v364, 2
        %v553 = vrot.slane %v365, 2
        %v554 = vsel %vm541, %v552, %v553
        %v555 = vrot.slane %v366, 2
        %v556 = vsel %vm541, %v553, %v555
        %v557 = vrot.slane %v367, 2
        %v558 = vrot.slane %v368, 2
        %v559 = vsel %vm541, %v557, %v558
        %v560 = vrot.slane %v369, 2
        %v561 = vsel %vm541, %v558, %v560
        %v562 = vrot.slane %v370, 2
        %v563 = vrot.slane %v371, 2
        %v564 = vsel %vm541, %v562, %v563
        %v565 = vrot.slane %v372, 2
        %v566 = vsel %vm541, %v563, %v565
        %v567 = vrot.slane %v373, 2
        %v568 = vrot.slane %v374, 2
        %v569 = vsel %vm541, %v567, %v568
        %v570 = vrot.slane %v375, 2
        %v571 = vsel %vm541, %v568, %v570
        %v572 = vrot.slane %v376, 2
        %v573 = vrot.slane %v377, 2
        %v574 = vsel %vm541, %v572, %v573
        %v575 = vrot.slane %v378, 2
        %v576 = vsel %vm541, %v573, %v575
        %v577 = vrot.slane %v379, 2
        %v578 = vrot.slane %v380, 2
        %v579 = vsel %vm541, %v577, %v578
        %v580 = vrot.slane %v381, 2
        %v581 = vsel %vm541, %v578, %v580
        %v582 = vrot.slane %v382, 2
        %v583 = vrot.slane %v383, 2
        %v584 = vsel %vm541, %v582, %v583
        %v585 = vrot.slane %v384, 2
        %v586 = vsel %vm541, %v583, %v585
        %v587 = vrot.slane %v385, 2
        %v588 = vrot.slane %v386, 2
        %v589 = vsel %vm541, %v587, %v588
        %v590 = vrot.slane %v387, 2
        %v591 = vsel %vm541, %v588, %v590
        %v592 = vrot.slane %v388, 2
        %v593 = vrot.slane %v389, 2
        %v594 = vsel %vm541, %v592, %v593
        %v595 = vrot.slane %v390, 2
        %v596 = vsel %vm541, %v593, %v595
        %v597 = vrot.slane %v391, 2
        %v598 = vrot.slane %v392, 2
        %v599 = vsel %vm541, %v597, %v598
        %v600 = vrot.slane %v393, 2
        %v601 = vsel %vm541, %v598, %v600
        %v602 = vrot.slane %v394, 2
        %v603 = vrot.slane %v395, 2
        %v604 = vsel %vm541, %v602, %v603
        %v605 = vrot.slane %v396, 2
        %v606 = vsel %vm541, %v603, %v605
        %v607 = vrot.slane %v397, 2
        %v608 = vrot.slane %v398, 2
        %v609 = vsel %vm541, %v607, %v608
        %v610 = vrot.slane %v399, 2
        %v611 = vsel %vm541, %v608, %v610
        %v612 = vrot.slane %v400, 2
        %v613 = vrot.slane %v401, 2
        %v614 = vsel %vm541, %v612, %v613
        %v615 = vrot.slane %v402, 2
        %v616 = vsel %vm541, %v613, %v615
        %v617 = vrot.slane %v403, 2
        %v618 = vrot.slane %v404, 2
        %v619 = vsel %vm541, %v617, %v618
        %v620 = vrot.slane %v405, 2
        %v621 = vsel %vm541, %v618, %v620
        %v625 = vrot.slane %v406, 1
        %v626 = vrot.slane %v407, 1
        %v627 = vsel %vm460, %v625, %v626
        %v628 = vrot.slane %v408, 1
        %v629 = vsel %vm460, %v626, %v628
        %v630 = vrot.slane %v406, 2
        %v631 = vrot.slane %v407, 2
        %v632 = vsel %vm541, %v630, %v631
        %v633 = vrot.slane %v408, 2
        %v634 = vsel %vm541, %v631, %v633
        %v638 = vrot.slane %v409, 1
        %v639 = vrot.slane %v410, 1
        %v640 = vsel %vm460, %v638, %v639
        %v641 = vrot.slane %v411, 1
        %v642 = vsel %vm460, %v639, %v641
        %v643 = vrot.slane %v409, 2
        %v644 = vrot.slane %v410, 2
        %v645 = vsel %vm541, %v643, %v644
        %v646 = vrot.slane %v411, 2
        %v647 = vsel %vm541, %v644, %v646
        %648 = vrot.lane.b32.xlu0 %v463, 16
        %v649 = vpop.permute.xlu0 %648
        %650 = vrot.lane.b32.xlu0 %v465, 16
        %v651 = vpop.permute.xlu0 %650
        %652 = vrot.lane.b32.xlu0 %v468, 16
        %v653 = vpop.permute.xlu0 %652
        %654 = vrot.lane.b32.xlu0 %v470, 16
        %v655 = vpop.permute.xlu0 %654
        %656 = vrot.lane.b32.xlu0 %v473, 16
        %v657 = vpop.permute.xlu0 %656
        %658 = vrot.lane.b32.xlu0 %v475, 16
        %v659 = vpop.permute.xlu0 %658
        %660 = vrot.lane.b32.xlu0 %v478, 16
        %v661 = vpop.permute.xlu0 %660
        %662 = vrot.lane.b32.xlu0 %v480, 16
        %v663 = vpop.permute.xlu0 %662
        %664 = vrot.lane.b32.xlu0 %v483, 16
        %v665 = vpop.permute.xlu0 %664
        %666 = vrot.lane.b32.xlu0 %v485, 16
        %v667 = vpop.permute.xlu0 %666
        %668 = vrot.lane.b32.xlu0 %v488, 16
        %v669 = vpop.permute.xlu0 %668
        %670 = vrot.lane.b32.xlu0 %v490, 16
        %v671 = vpop.permute.xlu0 %670
        %672 = vrot.lane.b32.xlu0 %v493, 16
        %v673 = vpop.permute.xlu0 %672
        %674 = vrot.lane.b32.xlu0 %v495, 16
        %v675 = vpop.permute.xlu0 %674
        %676 = vrot.lane.b32.xlu0 %v498, 16
        %v677 = vpop.permute.xlu0 %676
        %678 = vrot.lane.b32.xlu0 %v500, 16
        %v679 = vpop.permute.xlu0 %678
        %680 = vrot.lane.b32.xlu0 %v503, 16
        %v681 = vpop.permute.xlu0 %680
        %682 = vrot.lane.b32.xlu0 %v505, 16
        %v683 = vpop.permute.xlu0 %682
        %684 = vrot.lane.b32.xlu0 %v508, 16
        %v685 = vpop.permute.xlu0 %684
        %686 = vrot.lane.b32.xlu0 %v510, 16
        %v687 = vpop.permute.xlu0 %686
        %688 = vrot.lane.b32.xlu0 %v513, 16
        %v689 = vpop.permute.xlu0 %688
        %690 = vrot.lane.b32.xlu0 %v515, 16
        %v691 = vpop.permute.xlu0 %690
        %692 = vrot.lane.b32.xlu0 %v518, 16
        %v693 = vpop.permute.xlu0 %692
        %694 = vrot.lane.b32.xlu0 %v520, 16
        %v695 = vpop.permute.xlu0 %694
        %696 = vrot.lane.b32.xlu0 %v523, 16
        %v697 = vpop.permute.xlu0 %696
        %698 = vrot.lane.b32.xlu0 %v525, 16
        %v699 = vpop.permute.xlu0 %698
        %700 = vrot.lane.b32.xlu0 %v528, 16
        %v701 = vpop.permute.xlu0 %700
        %702 = vrot.lane.b32.xlu0 %v530, 16
        %v703 = vpop.permute.xlu0 %702
        %704 = vrot.lane.b32.xlu0 %v533, 16
        %v705 = vpop.permute.xlu0 %704
        %706 = vrot.lane.b32.xlu0 %v535, 16
        %v707 = vpop.permute.xlu0 %706
        %708 = vrot.lane.b32.xlu0 %v538, 16
        %v709 = vpop.permute.xlu0 %708
        %710 = vrot.lane.b32.xlu0 %v540, 16
        %v711 = vpop.permute.xlu0 %710
        %744 = vrot.lane.b32.xlu0 %v544, 32
        %v745 = vpop.permute.xlu0 %744
        %746 = vrot.lane.b32.xlu0 %v546, 32
        %v747 = vpop.permute.xlu0 %746
        %748 = vrot.lane.b32.xlu0 %v549, 32
        %v749 = vpop.permute.xlu0 %748
        %750 = vrot.lane.b32.xlu0 %v551, 32
        %v751 = vpop.permute.xlu0 %750
        %752 = vrot.lane.b32.xlu0 %v554, 32
        %v753 = vpop.permute.xlu0 %752
        %754 = vrot.lane.b32.xlu0 %v556, 32
        %v755 = vpop.permute.xlu0 %754
        %756 = vrot.lane.b32.xlu0 %v559, 32
        %v757 = vpop.permute.xlu0 %756
        %758 = vrot.lane.b32.xlu0 %v561, 32
        %v759 = vpop.permute.xlu0 %758
        %760 = vrot.lane.b32.xlu0 %v564, 32
        %v761 = vpop.permute.xlu0 %760
        %762 = vrot.lane.b32.xlu0 %v566, 32
        %v763 = vpop.permute.xlu0 %762
        %764 = vrot.lane.b32.xlu0 %v569, 32
        %v765 = vpop.permute.xlu0 %764
        %766 = vrot.lane.b32.xlu0 %v571, 32
        %v767 = vpop.permute.xlu0 %766
        %768 = vrot.lane.b32.xlu0 %v574, 32
        %v769 = vpop.permute.xlu0 %768
        %770 = vrot.lane.b32.xlu0 %v576, 32
        %v771 = vpop.permute.xlu0 %770
        %772 = vrot.lane.b32.xlu0 %v579, 32
        %v773 = vpop.permute.xlu0 %772
        %774 = vrot.lane.b32.xlu0 %v581, 32
        %v775 = vpop.permute.xlu0 %774
        %776 = vrot.lane.b32.xlu0 %v584, 32
        %v777 = vpop.permute.xlu0 %776
        %778 = vrot.lane.b32.xlu0 %v586, 32
        %v779 = vpop.permute.xlu0 %778
        %780 = vrot.lane.b32.xlu0 %v589, 32
        %v781 = vpop.permute.xlu0 %780
        %782 = vrot.lane.b32.xlu0 %v591, 32
        %v783 = vpop.permute.xlu0 %782
        %784 = vrot.lane.b32.xlu0 %v594, 32
        %v785 = vpop.permute.xlu0 %784
        %786 = vrot.lane.b32.xlu0 %v596, 32
        %v787 = vpop.permute.xlu0 %786
        %788 = vrot.lane.b32.xlu0 %v599, 32
        %v789 = vpop.permute.xlu0 %788
        %790 = vrot.lane.b32.xlu0 %v601, 32
        %v791 = vpop.permute.xlu0 %790
        %792 = vrot.lane.b32.xlu0 %v604, 32
        %v793 = vpop.permute.xlu0 %792
        %794 = vrot.lane.b32.xlu0 %v606, 32
        %v795 = vpop.permute.xlu0 %794
        %796 = vrot.lane.b32.xlu0 %v609, 32
        %v797 = vpop.permute.xlu0 %796
        %798 = vrot.lane.b32.xlu0 %v611, 32
        %v799 = vpop.permute.xlu0 %798
        %800 = vrot.lane.b32.xlu0 %v614, 32
        %v801 = vpop.permute.xlu0 %800
        %802 = vrot.lane.b32.xlu0 %v616, 32
        %v803 = vpop.permute.xlu0 %802
        %804 = vrot.lane.b32.xlu0 %v619, 32
        %v805 = vpop.permute.xlu0 %804
        %806 = vrot.lane.b32.xlu0 %v621, 32
        %v807 = vpop.permute.xlu0 %806
        %840 = vrot.lane.b32.xlu0 %v361, 48
        %v841 = vpop.permute.xlu0 %840
        %842 = vrot.lane.b32.xlu0 %v362, 48
        %v843 = vpop.permute.xlu0 %842
        %844 = vrot.lane.b32.xlu0 %v364, 48
        %v845 = vpop.permute.xlu0 %844
        %846 = vrot.lane.b32.xlu0 %v365, 48
        %v847 = vpop.permute.xlu0 %846
        %848 = vrot.lane.b32.xlu0 %v367, 48
        %v849 = vpop.permute.xlu0 %848
        %850 = vrot.lane.b32.xlu0 %v368, 48
        %v851 = vpop.permute.xlu0 %850
        %852 = vrot.lane.b32.xlu0 %v370, 48
        %v853 = vpop.permute.xlu0 %852
        %854 = vrot.lane.b32.xlu0 %v371, 48
        %v855 = vpop.permute.xlu0 %854
        %856 = vrot.lane.b32.xlu0 %v373, 48
        %v857 = vpop.permute.xlu0 %856
        %858 = vrot.lane.b32.xlu0 %v374, 48
        %v859 = vpop.permute.xlu0 %858
        %860 = vrot.lane.b32.xlu0 %v376, 48
        %v861 = vpop.permute.xlu0 %860
        %862 = vrot.lane.b32.xlu0 %v377, 48
        %v863 = vpop.permute.xlu0 %862
        %864 = vrot.lane.b32.xlu0 %v379, 48
        %v865 = vpop.permute.xlu0 %864
        %866 = vrot.lane.b32.xlu0 %v380, 48
        %v867 = vpop.permute.xlu0 %866
        %868 = vrot.lane.b32.xlu0 %v382, 48
        %v869 = vpop.permute.xlu0 %868
        %870 = vrot.lane.b32.xlu0 %v383, 48
        %v871 = vpop.permute.xlu0 %870
        %872 = vrot.lane.b32.xlu0 %v385, 48
        %v873 = vpop.permute.xlu0 %872
        %874 = vrot.lane.b32.xlu0 %v386, 48
        %v875 = vpop.permute.xlu0 %874
        %876 = vrot.lane.b32.xlu0 %v388, 48
        %v877 = vpop.permute.xlu0 %876
        %878 = vrot.lane.b32.xlu0 %v389, 48
        %v879 = vpop.permute.xlu0 %878
        %880 = vrot.lane.b32.xlu0 %v391, 48
        %v881 = vpop.permute.xlu0 %880
        %882 = vrot.lane.b32.xlu0 %v392, 48
        %v883 = vpop.permute.xlu0 %882
        %884 = vrot.lane.b32.xlu0 %v394, 48
        %v885 = vpop.permute.xlu0 %884
        %886 = vrot.lane.b32.xlu0 %v395, 48
        %v887 = vpop.permute.xlu0 %886
        %888 = vrot.lane.b32.xlu0 %v397, 48
        %v889 = vpop.permute.xlu0 %888
        %890 = vrot.lane.b32.xlu0 %v398, 48
        %v891 = vpop.permute.xlu0 %890
        %892 = vrot.lane.b32.xlu0 %v400, 48
        %v893 = vpop.permute.xlu0 %892
        %894 = vrot.lane.b32.xlu0 %v401, 48
        %v895 = vpop.permute.xlu0 %894
        %896 = vrot.lane.b32.xlu0 %v403, 48
        %v897 = vpop.permute.xlu0 %896
        %898 = vrot.lane.b32.xlu0 %v404, 48
        %v899 = vpop.permute.xlu0 %898
        %900 = vrot.lane.b32.xlu0 %v406, 48
        %v901 = vpop.permute.xlu0 %900
        %902 = vrot.lane.b32.xlu0 %v407, 48
        %v903 = vpop.permute.xlu0 %902
        %936 = vrot.lane.b32.xlu0 %v468, 64
        %v937 = vpop.permute.xlu0 %936
        %938 = vrot.lane.b32.xlu0 %v470, 64
        %v939 = vpop.permute.xlu0 %938
        %940 = vrot.lane.b32.xlu0 %v473, 64
        %v941 = vpop.permute.xlu0 %940
        %942 = vrot.lane.b32.xlu0 %v475, 64
        %v943 = vpop.permute.xlu0 %942
        %944 = vrot.lane.b32.xlu0 %v478, 64
        %v945 = vpop.permute.xlu0 %944
        %946 = vrot.lane.b32.xlu0 %v480, 64
        %v947 = vpop.permute.xlu0 %946
        %948 = vrot.lane.b32.xlu0 %v483, 64
        %v949 = vpop.permute.xlu0 %948
        %950 = vrot.lane.b32.xlu0 %v485, 64
        %v951 = vpop.permute.xlu0 %950
        %952 = vrot.lane.b32.xlu0 %v488, 64
        %v953 = vpop.permute.xlu0 %952
        %954 = vrot.lane.b32.xlu0 %v490, 64
        %v955 = vpop.permute.xlu0 %954
        %956 = vrot.lane.b32.xlu0 %v493, 64
        %v957 = vpop.permute.xlu0 %956
        %958 = vrot.lane.b32.xlu0 %v495, 64
        %v959 = vpop.permute.xlu0 %958
        %960 = vrot.lane.b32.xlu0 %v498, 64
        %v961 = vpop.permute.xlu0 %960
        %962 = vrot.lane.b32.xlu0 %v500, 64
        %v963 = vpop.permute.xlu0 %962
        %964 = vrot.lane.b32.xlu0 %v503, 64
        %v965 = vpop.permute.xlu0 %964
        %966 = vrot.lane.b32.xlu0 %v505, 64
        %v967 = vpop.permute.xlu0 %966
        %968 = vrot.lane.b32.xlu0 %v508, 64
        %v969 = vpop.permute.xlu0 %968
        %970 = vrot.lane.b32.xlu0 %v510, 64
        %v971 = vpop.permute.xlu0 %970
        %972 = vrot.lane.b32.xlu0 %v513, 64
        %v973 = vpop.permute.xlu0 %972
        %974 = vrot.lane.b32.xlu0 %v515, 64
        %v975 = vpop.permute.xlu0 %974
        %976 = vrot.lane.b32.xlu0 %v518, 64
        %v977 = vpop.permute.xlu0 %976
        %978 = vrot.lane.b32.xlu0 %v520, 64
        %v979 = vpop.permute.xlu0 %978
        %980 = vrot.lane.b32.xlu0 %v523, 64
        %v981 = vpop.permute.xlu0 %980
        %982 = vrot.lane.b32.xlu0 %v525, 64
        %v983 = vpop.permute.xlu0 %982
        %984 = vrot.lane.b32.xlu0 %v528, 64
        %v985 = vpop.permute.xlu0 %984
        %986 = vrot.lane.b32.xlu0 %v530, 64
        %v987 = vpop.permute.xlu0 %986
        %988 = vrot.lane.b32.xlu0 %v533, 64
        %v989 = vpop.permute.xlu0 %988
        %990 = vrot.lane.b32.xlu0 %v535, 64
        %v991 = vpop.permute.xlu0 %990
        %992 = vrot.lane.b32.xlu0 %v538, 64
        %v993 = vpop.permute.xlu0 %992
        %994 = vrot.lane.b32.xlu0 %v540, 64
        %v995 = vpop.permute.xlu0 %994
        %996 = vrot.lane.b32.xlu0 %v627, 64
        %v997 = vpop.permute.xlu0 %996
        %998 = vrot.lane.b32.xlu0 %v629, 64
        %v999 = vpop.permute.xlu0 %998
        %1032 = vrot.lane.b32.xlu0 %v549, 80
        %v1033 = vpop.permute.xlu0 %1032
        %1034 = vrot.lane.b32.xlu0 %v551, 80
        %v1035 = vpop.permute.xlu0 %1034
        %1036 = vrot.lane.b32.xlu0 %v554, 80
        %v1037 = vpop.permute.xlu0 %1036
        %1038 = vrot.lane.b32.xlu0 %v556, 80
        %v1039 = vpop.permute.xlu0 %1038
        %1040 = vrot.lane.b32.xlu0 %v559, 80
        %v1041 = vpop.permute.xlu0 %1040
        %1042 = vrot.lane.b32.xlu0 %v561, 80
        %v1043 = vpop.permute.xlu0 %1042
        %1044 = vrot.lane.b32.xlu0 %v564, 80
        %v1045 = vpop.permute.xlu0 %1044
        %1046 = vrot.lane.b32.xlu0 %v566, 80
        %v1047 = vpop.permute.xlu0 %1046
        %1048 = vrot.lane.b32.xlu0 %v569, 80
        %v1049 = vpop.permute.xlu0 %1048
        %1050 = vrot.lane.b32.xlu0 %v571, 80
        %v1051 = vpop.permute.xlu0 %1050
        %1052 = vrot.lane.b32.xlu0 %v574, 80
        %v1053 = vpop.permute.xlu0 %1052
        %1054 = vrot.lane.b32.xlu0 %v576, 80
        %v1055 = vpop.permute.xlu0 %1054
        %1056 = vrot.lane.b32.xlu0 %v579, 80
        %v1057 = vpop.permute.xlu0 %1056
        %1058 = vrot.lane.b32.xlu0 %v581, 80
        %v1059 = vpop.permute.xlu0 %1058
        %1060 = vrot.lane.b32.xlu0 %v584, 80
        %v1061 = vpop.permute.xlu0 %1060
        %1062 = vrot.lane.b32.xlu0 %v586, 80
        %v1063 = vpop.permute.xlu0 %1062
        %1064 = vrot.lane.b32.xlu0 %v589, 80
        %v1065 = vpop.permute.xlu0 %1064
        %1066 = vrot.lane.b32.xlu0 %v591, 80
        %v1067 = vpop.permute.xlu0 %1066
        %1068 = vrot.lane.b32.xlu0 %v594, 80
        %v1069 = vpop.permute.xlu0 %1068
        %1070 = vrot.lane.b32.xlu0 %v596, 80
        %v1071 = vpop.permute.xlu0 %1070
        %1072 = vrot.lane.b32.xlu0 %v599, 80
        %v1073 = vpop.permute.xlu0 %1072
        %1074 = vrot.lane.b32.xlu0 %v601, 80
        %v1075 = vpop.permute.xlu0 %1074
        %1076 = vrot.lane.b32.xlu0 %v604, 80
        %v1077 = vpop.permute.xlu0 %1076
        %1078 = vrot.lane.b32.xlu0 %v606, 80
        %v1079 = vpop.permute.xlu0 %1078
        %1080 = vrot.lane.b32.xlu0 %v609, 80
        %v1081 = vpop.permute.xlu0 %1080
        %1082 = vrot.lane.b32.xlu0 %v611, 80
        %v1083 = vpop.permute.xlu0 %1082
        %1084 = vrot.lane.b32.xlu0 %v614, 80
        %v1085 = vpop.permute.xlu0 %1084
        %1086 = vrot.lane.b32.xlu0 %v616, 80
        %v1087 = vpop.permute.xlu0 %1086
        %1088 = vrot.lane.b32.xlu0 %v619, 80
        %v1089 = vpop.permute.xlu0 %1088
        %1090 = vrot.lane.b32.xlu0 %v621, 80
        %v1091 = vpop.permute.xlu0 %1090
        %1092 = vrot.lane.b32.xlu0 %v632, 80
        %v1093 = vpop.permute.xlu0 %1092
        %1094 = vrot.lane.b32.xlu0 %v634, 80
        %v1095 = vpop.permute.xlu0 %1094
        %1128 = vrot.lane.b32.xlu0 %v364, 96
        %v1129 = vpop.permute.xlu0 %1128
        %1130 = vrot.lane.b32.xlu0 %v365, 96
        %v1131 = vpop.permute.xlu0 %1130
        %1132 = vrot.lane.b32.xlu0 %v367, 96
        %v1133 = vpop.permute.xlu0 %1132
        %1134 = vrot.lane.b32.xlu0 %v368, 96
        %v1135 = vpop.permute.xlu0 %1134
        %1136 = vrot.lane.b32.xlu0 %v370, 96
        %v1137 = vpop.permute.xlu0 %1136
        %1138 = vrot.lane.b32.xlu0 %v371, 96
        %v1139 = vpop.permute.xlu0 %1138
        %1140 = vrot.lane.b32.xlu0 %v373, 96
        %v1141 = vpop.permute.xlu0 %1140
        %1142 = vrot.lane.b32.xlu0 %v374, 96
        %v1143 = vpop.permute.xlu0 %1142
        %1144 = vrot.lane.b32.xlu0 %v376, 96
        %v1145 = vpop.permute.xlu0 %1144
        %1146 = vrot.lane.b32.xlu0 %v377, 96
        %v1147 = vpop.permute.xlu0 %1146
        %1148 = vrot.lane.b32.xlu0 %v379, 96
        %v1149 = vpop.permute.xlu0 %1148
        %1150 = vrot.lane.b32.xlu0 %v380, 96
        %v1151 = vpop.permute.xlu0 %1150
        %1152 = vrot.lane.b32.xlu0 %v382, 96
        %v1153 = vpop.permute.xlu0 %1152
        %1154 = vrot.lane.b32.xlu0 %v383, 96
        %v1155 = vpop.permute.xlu0 %1154
        %1156 = vrot.lane.b32.xlu0 %v385, 96
        %v1157 = vpop.permute.xlu0 %1156
        %1158 = vrot.lane.b32.xlu0 %v386, 96
        %v1159 = vpop.permute.xlu0 %1158
        %1160 = vrot.lane.b32.xlu0 %v388, 96
        %v1161 = vpop.permute.xlu0 %1160
        %1162 = vrot.lane.b32.xlu0 %v389, 96
        %v1163 = vpop.permute.xlu0 %1162
        %1164 = vrot.lane.b32.xlu0 %v391, 96
        %v1165 = vpop.permute.xlu0 %1164
        %1166 = vrot.lane.b32.xlu0 %v392, 96
        %v1167 = vpop.permute.xlu0 %1166
        %1168 = vrot.lane.b32.xlu0 %v394, 96
        %v1169 = vpop.permute.xlu0 %1168
        %1170 = vrot.lane.b32.xlu0 %v395, 96
        %v1171 = vpop.permute.xlu0 %1170
        %1172 = vrot.lane.b32.xlu0 %v397, 96
        %v1173 = vpop.permute.xlu0 %1172
        %1174 = vrot.lane.b32.xlu0 %v398, 96
        %v1175 = vpop.permute.xlu0 %1174
        %1176 = vrot.lane.b32.xlu0 %v400, 96
        %v1177 = vpop.permute.xlu0 %1176
        %1178 = vrot.lane.b32.xlu0 %v401, 96
        %v1179 = vpop.permute.xlu0 %1178
        %1180 = vrot.lane.b32.xlu0 %v403, 96
        %v1181 = vpop.permute.xlu0 %1180
        %1182 = vrot.lane.b32.xlu0 %v404, 96
        %v1183 = vpop.permute.xlu0 %1182
        %1184 = vrot.lane.b32.xlu0 %v406, 96
        %v1185 = vpop.permute.xlu0 %1184
        %1186 = vrot.lane.b32.xlu0 %v407, 96
        %v1187 = vpop.permute.xlu0 %1186
        %1188 = vrot.lane.b32.xlu0 %v409, 96
        %v1189 = vpop.permute.xlu0 %1188
        %1190 = vrot.lane.b32.xlu0 %v410, 96
        %v1191 = vpop.permute.xlu0 %1190
        %1224 = vrot.lane.b32.xlu0 %v473, 112
        %v1225 = vpop.permute.xlu0 %1224
        %1226 = vrot.lane.b32.xlu0 %v475, 112
        %v1227 = vpop.permute.xlu0 %1226
        %1228 = vrot.lane.b32.xlu0 %v478, 112
        %v1229 = vpop.permute.xlu0 %1228
        %1230 = vrot.lane.b32.xlu0 %v480, 112
        %v1231 = vpop.permute.xlu0 %1230
        %1232 = vrot.lane.b32.xlu0 %v483, 112
        %v1233 = vpop.permute.xlu0 %1232
        %1234 = vrot.lane.b32.xlu0 %v485, 112
        %v1235 = vpop.permute.xlu0 %1234
        %1236 = vrot.lane.b32.xlu0 %v488, 112
        %v1237 = vpop.permute.xlu0 %1236
        %1238 = vrot.lane.b32.xlu0 %v490, 112
        %v1239 = vpop.permute.xlu0 %1238
        %1240 = vrot.lane.b32.xlu0 %v493, 112
        %v1241 = vpop.permute.xlu0 %1240
        %1242 = vrot.lane.b32.xlu0 %v495, 112
        %v1243 = vpop.permute.xlu0 %1242
        %1244 = vrot.lane.b32.xlu0 %v498, 112
        %v1245 = vpop.permute.xlu0 %1244
        %1246 = vrot.lane.b32.xlu0 %v500, 112
        %v1247 = vpop.permute.xlu0 %1246
        %1248 = vrot.lane.b32.xlu0 %v503, 112
        %v1249 = vpop.permute.xlu0 %1248
        %1250 = vrot.lane.b32.xlu0 %v505, 112
        %v1251 = vpop.permute.xlu0 %1250
        %1252 = vrot.lane.b32.xlu0 %v508, 112
        %v1253 = vpop.permute.xlu0 %1252
        %1254 = vrot.lane.b32.xlu0 %v510, 112
        %v1255 = vpop.permute.xlu0 %1254
        %1256 = vrot.lane.b32.xlu0 %v513, 112
        %v1257 = vpop.permute.xlu0 %1256
        %1258 = vrot.lane.b32.xlu0 %v515, 112
        %v1259 = vpop.permute.xlu0 %1258
        %1260 = vrot.lane.b32.xlu0 %v518, 112
        %v1261 = vpop.permute.xlu0 %1260
        %1262 = vrot.lane.b32.xlu0 %v520, 112
        %v1263 = vpop.permute.xlu0 %1262
        %1264 = vrot.lane.b32.xlu0 %v523, 112
        %v1265 = vpop.permute.xlu0 %1264
        %1266 = vrot.lane.b32.xlu0 %v525, 112
        %v1267 = vpop.permute.xlu0 %1266
        %1268 = vrot.lane.b32.xlu0 %v528, 112
        %v1269 = vpop.permute.xlu0 %1268
        %1270 = vrot.lane.b32.xlu0 %v530, 112
        %v1271 = vpop.permute.xlu0 %1270
        %1272 = vrot.lane.b32.xlu0 %v533, 112
        %v1273 = vpop.permute.xlu0 %1272
        %1274 = vrot.lane.b32.xlu0 %v535, 112
        %v1275 = vpop.permute.xlu0 %1274
        %1276 = vrot.lane.b32.xlu0 %v538, 112
        %v1277 = vpop.permute.xlu0 %1276
        %1278 = vrot.lane.b32.xlu0 %v540, 112
        %v1279 = vpop.permute.xlu0 %1278
        %1280 = vrot.lane.b32.xlu0 %v627, 112
        %v1281 = vpop.permute.xlu0 %1280
        %1282 = vrot.lane.b32.xlu0 %v629, 112
        %v1283 = vpop.permute.xlu0 %1282
        %1284 = vrot.lane.b32.xlu0 %v640, 112
        %v1285 = vpop.permute.xlu0 %1284
        %1286 = vrot.lane.b32.xlu0 %v642, 112
        %v1287 = vpop.permute.xlu0 %1286
        %v1320 = vsel %vm237, %v358, %v649
        %v1321 = vsel %vm237, %v359, %v651
        %v1322 = vsel %vm237, %v361, %v653
        %v1323 = vsel %vm237, %v362, %v655
        %v1324 = vsel %vm237, %v364, %v657
        %v1325 = vsel %vm237, %v365, %v659
        %v1326 = vsel %vm237, %v367, %v661
        %v1327 = vsel %vm237, %v368, %v663
        %v1328 = vsel %vm237, %v370, %v665
        %v1329 = vsel %vm237, %v371, %v667
        %v1330 = vsel %vm237, %v373, %v669
        %v1331 = vsel %vm237, %v374, %v671
        %v1332 = vsel %vm237, %v376, %v673
        %v1333 = vsel %vm237, %v377, %v675
        %v1334 = vsel %vm237, %v379, %v677
        %v1335 = vsel %vm237, %v380, %v679
        %v1336 = vsel %vm237, %v382, %v681
        %v1337 = vsel %vm237, %v383, %v683
        %v1338 = vsel %vm237, %v385, %v685
        %v1339 = vsel %vm237, %v386, %v687
        %v1340 = vsel %vm237, %v388, %v689
        %v1341 = vsel %vm237, %v389, %v691
        %v1342 = vsel %vm237, %v391, %v693
        %v1343 = vsel %vm237, %v392, %v695
        %v1344 = vsel %vm237, %v394, %v697
        %v1345 = vsel %vm237, %v395, %v699
        %v1346 = vsel %vm237, %v397, %v701
        %v1347 = vsel %vm237, %v398, %v703
        %v1348 = vsel %vm237, %v400, %v705
        %v1349 = vsel %vm237, %v401, %v707
        %v1350 = vsel %vm237, %v403, %v709
        %v1351 = vsel %vm237, %v404, %v711
        %vm1352 = vcmask 261120
        %v1353 = vsel %vm1352, %v1320, %v745
        %v1354 = vsel %vm1352, %v1321, %v747
        %v1355 = vsel %vm1352, %v1322, %v749
        %v1356 = vsel %vm1352, %v1323, %v751
        %v1357 = vsel %vm1352, %v1324, %v753
        %v1358 = vsel %vm1352, %v1325, %v755
        %v1359 = vsel %vm1352, %v1326, %v757
        %v1360 = vsel %vm1352, %v1327, %v759
        %v1361 = vsel %vm1352, %v1328, %v761
        %v1362 = vsel %vm1352, %v1329, %v763
        %v1363 = vsel %vm1352, %v1330, %v765
        %v1364 = vsel %vm1352, %v1331, %v767
        %v1365 = vsel %vm1352, %v1332, %v769
        %v1366 = vsel %vm1352, %v1333, %v771
        %v1367 = vsel %vm1352, %v1334, %v773
        %v1368 = vsel %vm1352, %v1335, %v775
        %v1369 = vsel %vm1352, %v1336, %v777
        %v1370 = vsel %vm1352, %v1337, %v779
        %v1371 = vsel %vm1352, %v1338, %v781
        %v1372 = vsel %vm1352, %v1339, %v783
        %v1373 = vsel %vm1352, %v1340, %v785
        %v1374 = vsel %vm1352, %v1341, %v787
        %v1375 = vsel %vm1352, %v1342, %v789
        %v1376 = vsel %vm1352, %v1343, %v791
        %v1377 = vsel %vm1352, %v1344, %v793
        %v1378 = vsel %vm1352, %v1345, %v795
        %v1379 = vsel %vm1352, %v1346, %v797
        %v1380 = vsel %vm1352, %v1347, %v799
        %v1381 = vsel %vm1352, %v1348, %v801
        %v1382 = vsel %vm1352, %v1349, %v803
        %v1383 = vsel %vm1352, %v1350, %v805
        %v1384 = vsel %vm1352, %v1351, %v807
        %vm1385 = vcmask 392192
        %v1386 = vsel %vm1385, %v1353, %v841
        %v1387 = vsel %vm1385, %v1354, %v843
        %v1388 = vsel %vm1385, %v1355, %v845
        %v1389 = vsel %vm1385, %v1356, %v847
        %v1390 = vsel %vm1385, %v1357, %v849
        %v1391 = vsel %vm1385, %v1358, %v851
        %v1392 = vsel %vm1385, %v1359, %v853
        %v1393 = vsel %vm1385, %v1360, %v855
        %v1394 = vsel %vm1385, %v1361, %v857
        %v1395 = vsel %vm1385, %v1362, %v859
        %v1396 = vsel %vm1385, %v1363, %v861
        %v1397 = vsel %vm1385, %v1364, %v863
        %v1398 = vsel %vm1385, %v1365, %v865
        %v1399 = vsel %vm1385, %v1366, %v867
        %v1400 = vsel %vm1385, %v1367, %v869
        %v1401 = vsel %vm1385, %v1368, %v871
        %v1402 = vsel %vm1385, %v1369, %v873
        %v1403 = vsel %vm1385, %v1370, %v875
        %v1404 = vsel %vm1385, %v1371, %v877
        %v1405 = vsel %vm1385, %v1372, %v879
        %v1406 = vsel %vm1385, %v1373, %v881
        %v1407 = vsel %vm1385, %v1374, %v883
        %v1408 = vsel %vm1385, %v1375, %v885
        %v1409 = vsel %vm1385, %v1376, %v887
        %v1410 = vsel %vm1385, %v1377, %v889
        %v1411 = vsel %vm1385, %v1378, %v891
        %v1412 = vsel %vm1385, %v1379, %v893
        %v1413 = vsel %vm1385, %v1380, %v895
        %v1414 = vsel %vm1385, %v1381, %v897
        %v1415 = vsel %vm1385, %v1382, %v899
        %v1416 = vsel %vm1385, %v1383, %v901
        %v1417 = vsel %vm1385, %v1384, %v903
        %vm1418 = vcmask 523264
        %v1419 = vsel %vm1418, %v1386, %v937
        %v1420 = vsel %vm1418, %v1387, %v939
        %v1421 = vsel %vm1418, %v1388, %v941
        %v1422 = vsel %vm1418, %v1389, %v943
        %v1423 = vsel %vm1418, %v1390, %v945
        %v1424 = vsel %vm1418, %v1391, %v947
        %v1425 = vsel %vm1418, %v1392, %v949
        %v1426 = vsel %vm1418, %v1393, %v951
        %v1427 = vsel %vm1418, %v1394, %v953
        %v1428 = vsel %vm1418, %v1395, %v955
        %v1429 = vsel %vm1418, %v1396, %v957
        %v1430 = vsel %vm1418, %v1397, %v959
        %v1431 = vsel %vm1418, %v1398, %v961
        %v1432 = vsel %vm1418, %v1399, %v963
        %v1433 = vsel %vm1418, %v1400, %v965
        %v1434 = vsel %vm1418, %v1401, %v967
        %v1435 = vsel %vm1418, %v1402, %v969
        %v1436 = vsel %vm1418, %v1403, %v971
        %v1437 = vsel %vm1418, %v1404, %v973
        %v1438 = vsel %vm1418, %v1405, %v975
        %v1439 = vsel %vm1418, %v1406, %v977
        %v1440 = vsel %vm1418, %v1407, %v979
        %v1441 = vsel %vm1418, %v1408, %v981
        %v1442 = vsel %vm1418, %v1409, %v983
        %v1443 = vsel %vm1418, %v1410, %v985
        %v1444 = vsel %vm1418, %v1411, %v987
        %v1445 = vsel %vm1418, %v1412, %v989
        %v1446 = vsel %vm1418, %v1413, %v991
        %v1447 = vsel %vm1418, %v1414, %v993
        %v1448 = vsel %vm1418, %v1415, %v995
        %v1449 = vsel %vm1418, %v1416, %v997
        %v1450 = vsel %vm1418, %v1417, %v999
        %vm1451 = vcmask 654336
        %v1452 = vsel %vm1451, %v1419, %v1033
        %v1453 = vsel %vm1451, %v1420, %v1035
        %v1454 = vsel %vm1451, %v1421, %v1037
        %v1455 = vsel %vm1451, %v1422, %v1039
        %v1456 = vsel %vm1451, %v1423, %v1041
        %v1457 = vsel %vm1451, %v1424, %v1043
        %v1458 = vsel %vm1451, %v1425, %v1045
        %v1459 = vsel %vm1451, %v1426, %v1047
        %v1460 = vsel %vm1451, %v1427, %v1049
        %v1461 = vsel %vm1451, %v1428, %v1051
        %v1462 = vsel %vm1451, %v1429, %v1053
        %v1463 = vsel %vm1451, %v1430, %v1055
        %v1464 = vsel %vm1451, %v1431, %v1057
        %v1465 = vsel %vm1451, %v1432, %v1059
        %v1466 = vsel %vm1451, %v1433, %v1061
        %v1467 = vsel %vm1451, %v1434, %v1063
        %v1468 = vsel %vm1451, %v1435, %v1065
        %v1469 = vsel %vm1451, %v1436, %v1067
        %v1470 = vsel %vm1451, %v1437, %v1069
        %v1471 = vsel %vm1451, %v1438, %v1071
        %v1472 = vsel %vm1451, %v1439, %v1073
        %v1473 = vsel %vm1451, %v1440, %v1075
        %v1474 = vsel %vm1451, %v1441, %v1077
        %v1475 = vsel %vm1451, %v1442, %v1079
        %v1476 = vsel %vm1451, %v1443, %v1081
        %v1477 = vsel %vm1451, %v1444, %v1083
        %v1478 = vsel %vm1451, %v1445, %v1085
        %v1479 = vsel %vm1451, %v1446, %v1087
        %v1480 = vsel %vm1451, %v1447, %v1089
        %v1481 = vsel %vm1451, %v1448, %v1091
        %v1482 = vsel %vm1451, %v1449, %v1093
        %v1483 = vsel %vm1451, %v1450, %v1095
        %vm1484 = vcmask 785408
        %v1485 = vsel %vm1484, %v1452, %v1129
        %v1486 = vsel %vm1484, %v1453, %v1131
        %v1487 = vsel %vm1484, %v1454, %v1133
        %v1488 = vsel %vm1484, %v1455, %v1135
        %v1489 = vsel %vm1484, %v1456, %v1137
        %v1490 = vsel %vm1484, %v1457, %v1139
        %v1491 = vsel %vm1484, %v1458, %v1141
        %v1492 = vsel %vm1484, %v1459, %v1143
        %v1493 = vsel %vm1484, %v1460, %v1145
        %v1494 = vsel %vm1484, %v1461, %v1147
        %v1495 = vsel %vm1484, %v1462, %v1149
        %v1496 = vsel %vm1484, %v1463, %v1151
        %v1497 = vsel %vm1484, %v1464, %v1153
        %v1498 = vsel %vm1484, %v1465, %v1155
        %v1499 = vsel %vm1484, %v1466, %v1157
        %v1500 = vsel %vm1484, %v1467, %v1159
        %v1501 = vsel %vm1484, %v1468, %v1161
        %v1502 = vsel %vm1484, %v1469, %v1163
        %v1503 = vsel %vm1484, %v1470, %v1165
        %v1504 = vsel %vm1484, %v1471, %v1167
        %v1505 = vsel %vm1484, %v1472, %v1169
        %v1506 = vsel %vm1484, %v1473, %v1171
        %v1507 = vsel %vm1484, %v1474, %v1173
        %v1508 = vsel %vm1484, %v1475, %v1175
        %v1509 = vsel %vm1484, %v1476, %v1177
        %v1510 = vsel %vm1484, %v1477, %v1179
        %v1511 = vsel %vm1484, %v1478, %v1181
        %v1512 = vsel %vm1484, %v1479, %v1183
        %v1513 = vsel %vm1484, %v1480, %v1185
        %v1514 = vsel %vm1484, %v1481, %v1187
        %v1515 = vsel %vm1484, %v1482, %v1189
        %v1516 = vsel %vm1484, %v1483, %v1191
        %vm1517 = vcmask 916480
        %v1518 = vsel %vm1517, %v1485, %v1225
        %v1519 = vsel %vm1517, %v1486, %v1227
        %v1520 = vsel %vm1517, %v1487, %v1229
        %v1521 = vsel %vm1517, %v1488, %v1231
        %v1522 = vsel %vm1517, %v1489, %v1233
        %v1523 = vsel %vm1517, %v1490, %v1235
        %v1524 = vsel %vm1517, %v1491, %v1237
        %v1525 = vsel %vm1517, %v1492, %v1239
        %v1526 = vsel %vm1517, %v1493, %v1241
        %v1527 = vsel %vm1517, %v1494, %v1243
        %v1528 = vsel %vm1517, %v1495, %v1245
        %v1529 = vsel %vm1517, %v1496, %v1247
        %v1530 = vsel %vm1517, %v1497, %v1249
        %v1531 = vsel %vm1517, %v1498, %v1251
        %v1532 = vsel %vm1517, %v1499, %v1253
        %v1533 = vsel %vm1517, %v1500, %v1255
        %v1534 = vsel %vm1517, %v1501, %v1257
        %v1535 = vsel %vm1517, %v1502, %v1259
        %v1536 = vsel %vm1517, %v1503, %v1261
        %v1537 = vsel %vm1517, %v1504, %v1263
        %v1538 = vsel %vm1517, %v1505, %v1265
        %v1539 = vsel %vm1517, %v1506, %v1267
        %v1540 = vsel %vm1517, %v1507, %v1269
        %v1541 = vsel %vm1517, %v1508, %v1271
        %v1542 = vsel %vm1517, %v1509, %v1273
        %v1543 = vsel %vm1517, %v1510, %v1275
        %v1544 = vsel %vm1517, %v1511, %v1277
        %v1545 = vsel %vm1517, %v1512, %v1279
        %v1546 = vsel %vm1517, %v1513, %v1281
        %v1547 = vsel %vm1517, %v1514, %v1283
        %v1548 = vsel %vm1517, %v1515, %v1285
        %v1549 = vsel %vm1517, %v1516, %v1287
        %v1550 = vld [vmem:[%s1] sm:$0xff]
        %v1551 = vld [vmem:[%s1 + $0x8] sm:$0xff]
        %v1552 = vld [vmem:[%s1 + $0x10] sm:$0xff]
        %v1553 = vld [vmem:[%s1 + $0x18] sm:$0xff]
        %v1554 = vld [vmem:[%s1 + $0x20] sm:$0xff]
        %v1555 = vld [vmem:[%s1 + $0x28] sm:$0xff]
        %v1556 = vld [vmem:[%s1 + $0x30] sm:$0xff]
        %v1557 = vld [vmem:[%s1 + $0x38] sm:$0xff]
        %v1558 = vld [vmem:[%s1 + $0x40] sm:$0xff]
        %v1559 = vld [vmem:[%s1 + $0x48] sm:$0xff]
        %v1560 = vld [vmem:[%s1 + $0x50] sm:$0xff]
        %v1561 = vld [vmem:[%s1 + $0x58] sm:$0xff]
        %v1562 = vld [vmem:[%s1 + $0x60] sm:$0xff]
        %v1563 = vld [vmem:[%s1 + $0x68] sm:$0xff]
        %v1564 = vld [vmem:[%s1 + $0x70] sm:$0xff]
        %v1565 = vld [vmem:[%s1 + $0x78] sm:$0xff]
        %v1566 = vld [vmem:[%s1 + $0x80] sm:$0xff]
        %v1567 = vld [vmem:[%s1 + $0x88] sm:$0xff]
        %v1568 = vsel %vm237, %v554, 0
        %v1570 = vsel %vm237, %v556, 0
        %v1572 = vsel %vm237, %v559, 0
        %v1574 = vsel %vm237, %v561, 0
        %v1576 = vsel %vm237, %v564, 0
        %v1578 = vsel %vm237, %v566, 0
        %v1580 = vsel %vm237, %v569, 0
        %v1582 = vsel %vm237, %v571, 0
        %v1584 = vsel %vm237, %v574, 0
        %v1586 = vsel %vm237, %v576, 0
        %v1588 = vsel %vm237, %v579, 0
        %v1590 = vsel %vm237, %v581, 0
        %v1592 = vsel %vm237, %v584, 0
        %v1594 = vsel %vm237, %v586, 0
        %v1596 = vsel %vm237, %v589, 0
        %v1598 = vsel %vm237, %v591, 0
        %v1600 = vsel %vm237, %v594, 0
        %v1602 = vsel %vm237, %v596, 0
        %v1604 = vsel %vm237, %v599, 0
        %v1606 = vsel %vm237, %v601, 0
        %v1608 = vsel %vm237, %v604, 0
        %v1610 = vsel %vm237, %v606, 0
        %v1612 = vsel %vm237, %v609, 0
        %v1614 = vsel %vm237, %v611, 0
        %v1616 = vsel %vm237, %v614, 0
        %v1618 = vsel %vm237, %v616, 0
        %v1620 = vsel %vm237, %v619, 0
        %v1622 = vsel %vm237, %v621, 0
        %v1624 = vsel %vm237, %v632, 0
        %v1626 = vsel %vm237, %v634, 0
        %v1628 = vsel %vm237, %v645, 0
        %v1630 = vsel %vm237, %v647, 0
        %1632 = vmatprep.subr.mxu0 0.0
        %1633 = vmatpush1.msra.mxu0 %v1565
        %1634 = vmatprep.subr.mxu0 0.0
        %1635 = vmatpush1.msra.mxu0 %v1564
        %1636 = vmatprep.subr.mxu0 0.0
        %1637 = vmatpush1.msra.mxu0 %v1563
        %1638 = vmatprep.subr.mxu0 0.0
        %1639 = vmatpush1.msra.mxu0 %v1562
        %1640 = vmatprep.subr.mxu0 0.0
        %1641 = vmatpush1.msra.mxu0 %v1561
        %1642 = vmatprep.subr.mxu0 0.0
        %1643 = vmatpush1.msra.mxu0 %v1560
        %1644 = vmatprep.subr.mxu0 0.0
        %1645 = vmatpush1.msra.mxu0 %v1559
        %1646 = vmatprep.subr.mxu0 0.0
        %1647 = vmatpush1.msra.mxu0 %v1558
        %1648 = vmatprep.subr.mxu0 0.0
        %1649 = vmatpush1.msra.mxu0 %v1557
        %1650 = vmatprep.subr.mxu0 0.0
        %1651 = vmatpush1.msra.mxu0 %v1556
        %1652 = vmatprep.subr.mxu0 0.0
        %1653 = vmatpush1.msra.mxu0 %v1555
        %1654 = vmatprep.subr.mxu0 0.0
        %1655 = vmatpush1.msra.mxu0 %v1554
        %1656 = vmatprep.subr.mxu0 0.0
        %1657 = vmatpush1.msra.mxu0 %v1553
        %1658 = vmatprep.subr.mxu0 0.0
        %1659 = vmatpush1.msra.mxu0 %v1552
        %1660 = vmatprep.subr.mxu0 0.0
        %1661 = vmatpush1.msra.mxu0 %v1551
        %1662 = vmatprep.subr.mxu0 0.0
        %1663 = vmatpush1.msra.mxu0 %v1550
        %1664 = vmatprep.subr.mxu0 0.0
        %1665 = vmatpush2.msra.mxu0 0.0
        %1666 = vmatprep.subr.mxu0 0.0
        %1667 = vmatpush2.msra.mxu0 0.0
        %1668 = vmatprep.subr.mxu0 0.0
        %1669 = vmatpush2.msra.mxu0 0.0
        %1670 = vmatprep.subr.mxu0 0.0
        %1671 = vmatpush2.msra.mxu0 0.0
        %1672 = vmatprep.subr.mxu0 0.0
        %1673 = vmatpush2.msra.mxu0 0.0
        %1674 = vmatprep.subr.mxu0 0.0
        %1675 = vmatpush2.msra.mxu0 0.0
        %1676 = vmatprep.subr.mxu0 0.0
        %1677 = vmatpush2.msra.mxu0 0.0
        %1678 = vmatprep.subr.mxu0 0.0
        %1679 = vmatpush2.msra.mxu0 0.0
        %1680 = vmatprep.subr.mxu0 0.0
        %1681 = vmatpush2.msra.mxu0 0.0
        %1682 = vmatprep.subr.mxu0 0.0
        %1683 = vmatpush2.msra.mxu0 0.0
        %1684 = vmatprep.subr.mxu0 0.0
        %1685 = vmatpush2.msra.mxu0 0.0
        %1686 = vmatprep.subr.mxu0 0.0
        %1687 = vmatpush2.msra.mxu0 0.0
        %1688 = vmatprep.subr.mxu0 0.0
        %1689 = vmatpush2.msra.mxu0 0.0
        %1690 = vmatprep.subr.mxu0 0.0
        %1691 = vmatpush2.msra.mxu0 0.0
        %1692 = vmatprep.subr.mxu0 0.0
        %1693 = vmatpush2.msra.mxu0 %v1567
        %1694 = vmatprep.subr.mxu0 0.0
        %1695 = vmatpush2.msra.mxu0 %v1566
        %1696 = vmatprep.mubr.f32.mxu0 %v1568
        %1697 = vmatmul.mubr.f32.gmra.mxu0 %v1518
        %v1698 = vpop.f32.mrf.mxu0
        %v1699 = vadd.f32 0.0, %v1698
        %v1700 = vpop.f32.mrf.mxu0
        %1701 = vmatprep.mubr.f32.mxu0 %v1570
        %1702 = vmatmul.mubr.f32.gmra.mxu0 %v1519
        %v1703 = vpop.f32.mrf.mxu0
        %v1704 = vadd.f32 0.0, %v1703
        %v1705 = vpop.f32.mrf.mxu0
        %1706 = vmatprep.mubr.f32.mxu0 %v1572
        %1707 = vmatmul.mubr.f32.gmra.mxu0 %v1520
        %v1708 = vpop.f32.mrf.mxu0
        %v1709 = vadd.f32 0.0, %v1708
        %v1710 = vpop.f32.mrf.mxu0
        %1711 = vmatprep.mubr.f32.mxu0 %v1574
        %1712 = vmatmul.mubr.f32.gmra.mxu0 %v1521
        %v1713 = vpop.f32.mrf.mxu0
        %v1714 = vadd.f32 0.0, %v1713
        %v1715 = vpop.f32.mrf.mxu0
        %1716 = vmatprep.mubr.f32.mxu0 %v1576
        %1717 = vmatmul.mubr.f32.gmra.mxu0 %v1522
        %v1718 = vpop.f32.mrf.mxu0
        %v1719 = vadd.f32 0.0, %v1718
        %v1720 = vpop.f32.mrf.mxu0
        %1721 = vmatprep.mubr.f32.mxu0 %v1578
        %1722 = vmatmul.mubr.f32.gmra.mxu0 %v1523
        %v1723 = vpop.f32.mrf.mxu0
        %v1724 = vadd.f32 0.0, %v1723
        %v1725 = vpop.f32.mrf.mxu0
        %1726 = vmatprep.mubr.f32.mxu0 %v1580
        %1727 = vmatmul.mubr.f32.gmra.mxu0 %v1524
        %v1728 = vpop.f32.mrf.mxu0
        %v1729 = vadd.f32 0.0, %v1728
        %v1730 = vpop.f32.mrf.mxu0
        %1731 = vmatprep.mubr.f32.mxu0 %v1582
        %1732 = vmatmul.mubr.f32.gmra.mxu0 %v1525
        %v1733 = vpop.f32.mrf.mxu0
        %v1734 = vadd.f32 0.0, %v1733
        %v1735 = vpop.f32.mrf.mxu0
        %1736 = vmatprep.mubr.f32.mxu0 %v1584
        %1737 = vmatmul.mubr.f32.gmra.mxu0 %v1526
        %v1738 = vpop.f32.mrf.mxu0
        %v1739 = vadd.f32 0.0, %v1738
        %v1740 = vpop.f32.mrf.mxu0
        %1741 = vmatprep.mubr.f32.mxu0 %v1586
        %1742 = vmatmul.mubr.f32.gmra.mxu0 %v1527
        %v1743 = vpop.f32.mrf.mxu0
        %v1744 = vadd.f32 0.0, %v1743
        %v1745 = vpop.f32.mrf.mxu0
        %1746 = vmatprep.mubr.f32.mxu0 %v1588
        %1747 = vmatmul.mubr.f32.gmra.mxu0 %v1528
        %v1748 = vpop.f32.mrf.mxu0
        %v1749 = vadd.f32 0.0, %v1748
        %v1750 = vpop.f32.mrf.mxu0
        %1751 = vmatprep.mubr.f32.mxu0 %v1590
        %1752 = vmatmul.mubr.f32.gmra.mxu0 %v1529
        %v1753 = vpop.f32.mrf.mxu0
        %v1754 = vadd.f32 0.0, %v1753
        %v1755 = vpop.f32.mrf.mxu0
        %1756 = vmatprep.mubr.f32.mxu0 %v1592
        %1757 = vmatmul.mubr.f32.gmra.mxu0 %v1530
        %v1758 = vpop.f32.mrf.mxu0
        %v1759 = vadd.f32 0.0, %v1758
        %v1760 = vpop.f32.mrf.mxu0
        %1761 = vmatprep.mubr.f32.mxu0 %v1594
        %1762 = vmatmul.mubr.f32.gmra.mxu0 %v1531
        %v1763 = vpop.f32.mrf.mxu0
        %v1764 = vadd.f32 0.0, %v1763
        %v1765 = vpop.f32.mrf.mxu0
        %1766 = vmatprep.mubr.f32.mxu0 %v1596
        %1767 = vmatmul.mubr.f32.gmra.mxu0 %v1532
        %v1768 = vpop.f32.mrf.mxu0
        %v1769 = vadd.f32 0.0, %v1768
        %v1770 = vpop.f32.mrf.mxu0
        %1771 = vmatprep.mubr.f32.mxu0 %v1598
        %1772 = vmatmul.mubr.f32.gmra.mxu0 %v1533
        %v1773 = vpop.f32.mrf.mxu0
        %v1774 = vadd.f32 0.0, %v1773
        %v1775 = vpop.f32.mrf.mxu0
        %1776 = vmatprep.mubr.f32.mxu0 %v1600
        %1777 = vmatmul.mubr.f32.gmra.mxu0 %v1534
        %v1778 = vpop.f32.mrf.mxu0
        %v1779 = vadd.f32 0.0, %v1778
        %v1780 = vpop.f32.mrf.mxu0
        %1781 = vmatprep.mubr.f32.mxu0 %v1602
        %1782 = vmatmul.mubr.f32.gmra.mxu0 %v1535
        %v1783 = vpop.f32.mrf.mxu0
        %v1784 = vadd.f32 0.0, %v1783
        %v1785 = vpop.f32.mrf.mxu0
        %1786 = vmatprep.mubr.f32.mxu0 %v1604
        %1787 = vmatmul.mubr.f32.gmra.mxu0 %v1536
        %v1788 = vpop.f32.mrf.mxu0
        %v1789 = vadd.f32 0.0, %v1788
        %v1790 = vpop.f32.mrf.mxu0
        %1791 = vmatprep.mubr.f32.mxu0 %v1606
        %1792 = vmatmul.mubr.f32.gmra.mxu0 %v1537
        %v1793 = vpop.f32.mrf.mxu0
        %v1794 = vadd.f32 0.0, %v1793
        %v1795 = vpop.f32.mrf.mxu0
        %1796 = vmatprep.mubr.f32.mxu0 %v1608
        %1797 = vmatmul.mubr.f32.gmra.mxu0 %v1538
        %v1798 = vpop.f32.mrf.mxu0
        %v1799 = vadd.f32 0.0, %v1798
        %v1800 = vpop.f32.mrf.mxu0
        %1801 = vmatprep.mubr.f32.mxu0 %v1610
        %1802 = vmatmul.mubr.f32.gmra.mxu0 %v1539
        %v1803 = vpop.f32.mrf.mxu0
        %v1804 = vadd.f32 0.0, %v1803
        %v1805 = vpop.f32.mrf.mxu0
        %1806 = vmatprep.mubr.f32.mxu0 %v1612
        %1807 = vmatmul.mubr.f32.gmra.mxu0 %v1540
        %v1808 = vpop.f32.mrf.mxu0
        %v1809 = vadd.f32 0.0, %v1808
        %v1810 = vpop.f32.mrf.mxu0
        %1811 = vmatprep.mubr.f32.mxu0 %v1614
        %1812 = vmatmul.mubr.f32.gmra.mxu0 %v1541
        %v1813 = vpop.f32.mrf.mxu0
        %v1814 = vadd.f32 0.0, %v1813
        %v1815 = vpop.f32.mrf.mxu0
        %1816 = vmatprep.mubr.f32.mxu0 %v1616
        %1817 = vmatmul.mubr.f32.gmra.mxu0 %v1542
        %v1818 = vpop.f32.mrf.mxu0
        %v1819 = vadd.f32 0.0, %v1818
        %v1820 = vpop.f32.mrf.mxu0
        %1821 = vmatprep.mubr.f32.mxu0 %v1618
        %1822 = vmatmul.mubr.f32.gmra.mxu0 %v1543
        %v1823 = vpop.f32.mrf.mxu0
        %v1824 = vadd.f32 0.0, %v1823
        %v1825 = vpop.f32.mrf.mxu0
        %1826 = vmatprep.mubr.f32.mxu0 %v1620
        %1827 = vmatmul.mubr.f32.gmra.mxu0 %v1544
        %v1828 = vpop.f32.mrf.mxu0
        %v1829 = vadd.f32 0.0, %v1828
        %v1830 = vpop.f32.mrf.mxu0
        %1831 = vmatprep.mubr.f32.mxu0 %v1622
        %1832 = vmatmul.mubr.f32.gmra.mxu0 %v1545
        %v1833 = vpop.f32.mrf.mxu0
        %v1834 = vadd.f32 0.0, %v1833
        %v1835 = vpop.f32.mrf.mxu0
        %1836 = vmatprep.mubr.f32.mxu0 %v1624
        %1837 = vmatmul.mubr.f32.gmra.mxu0 %v1546
        %v1838 = vpop.f32.mrf.mxu0
        %v1839 = vadd.f32 0.0, %v1838
        %v1840 = vpop.f32.mrf.mxu0
        %1841 = vmatprep.mubr.f32.mxu0 %v1626
        %1842 = vmatmul.mubr.f32.gmra.mxu0 %v1547
        %v1843 = vpop.f32.mrf.mxu0
        %v1844 = vadd.f32 0.0, %v1843
        %v1845 = vpop.f32.mrf.mxu0
        %1846 = vmatprep.mubr.f32.mxu0 %v1628
        %1847 = vmatmul.mubr.f32.gmra.mxu0 %v1548
        %v1848 = vpop.f32.mrf.mxu0
        %v1849 = vadd.f32 0.0, %v1848
        %v1850 = vpop.f32.mrf.mxu0
        %1851 = vmatprep.mubr.f32.mxu0 %v1630
        %1852 = vmatmul.mubr.f32.gmra.mxu0 %v1549
        %v1853 = vpop.f32.mrf.mxu0
        %v1854 = vadd.f32 0.0, %v1853
        %v1855 = vpop.f32.mrf.mxu0
        %1856 = vdwg.mxu0
        %1857 = vst.msk [vmem:[%s236] sm:$0xff] %vm237, %v1699
        %1858 = vst.msk [vmem:[%s236 + $0x8] sm:$0xff] %vm237, %v1704
        %1859 = vst.msk [vmem:[%s236 + $0x10] sm:$0xff] %vm237, %v1709
        %1860 = vst.msk [vmem:[%s236 + $0x18] sm:$0xff] %vm237, %v1714
        %1861 = vst.msk [vmem:[%s236 + $0x20] sm:$0xff] %vm237, %v1719
        %1862 = vst.msk [vmem:[%s236 + $0x28] sm:$0xff] %vm237, %v1724
        %1863 = vst.msk [vmem:[%s236 + $0x30] sm:$0xff] %vm237, %v1729
        %1864 = vst.msk [vmem:[%s236 + $0x38] sm:$0xff] %vm237, %v1734
        %1865 = vst.msk [vmem:[%s236 + $0x40] sm:$0xff] %vm237, %v1739
        %1866 = vst.msk [vmem:[%s236 + $0x48] sm:$0xff] %vm237, %v1744
        %1867 = vst.msk [vmem:[%s236 + $0x50] sm:$0xff] %vm237, %v1749
        %1868 = vst.msk [vmem:[%s236 + $0x58] sm:$0xff] %vm237, %v1754
        %1869 = vst.msk [vmem:[%s236 + $0x60] sm:$0xff] %vm237, %v1759
        %1870 = vst.msk [vmem:[%s236 + $0x68] sm:$0xff] %vm237, %v1764
        %1871 = vst.msk [vmem:[%s236 + $0x70] sm:$0xff] %vm237, %v1769
        %1872 = vst.msk [vmem:[%s236 + $0x78] sm:$0xff] %vm237, %v1774
        %1873 = vst.msk [vmem:[%s236 + $0x80] sm:$0xff] %vm237, %v1779
        %1874 = vst.msk [vmem:[%s236 + $0x88] sm:$0xff] %vm237, %v1784
        %1875 = vst.msk [vmem:[%s236 + $0x90] sm:$0xff] %vm237, %v1789
        %1876 = vst.msk [vmem:[%s236 + $0x98] sm:$0xff] %vm237, %v1794
        %1877 = vst.msk [vmem:[%s236 + $0xa0] sm:$0xff] %vm237, %v1799
        %1878 = vst.msk [vmem:[%s236 + $0xa8] sm:$0xff] %vm237, %v1804
        %1879 = vst.msk [vmem:[%s236 + $0xb0] sm:$0xff] %vm237, %v1809
        %1880 = vst.msk [vmem:[%s236 + $0xb8] sm:$0xff] %vm237, %v1814
        %1881 = vst.msk [vmem:[%s236 + $0xc0] sm:$0xff] %vm237, %v1819
        %1882 = vst.msk [vmem:[%s236 + $0xc8] sm:$0xff] %vm237, %v1824
        %1883 = vst.msk [vmem:[%s236 + $0xd0] sm:$0xff] %vm237, %v1829
        %1884 = vst.msk [vmem:[%s236 + $0xd8] sm:$0xff] %vm237, %v1834
        %1885 = vst.msk [vmem:[%s236 + $0xe0] sm:$0xff] %vm237, %v1839
        %1886 = vst.msk [vmem:[%s236 + $0xe8] sm:$0xff] %vm237, %v1844
        %1887 = vst.msk [vmem:[%s236 + $0xf0] sm:$0xff] %vm237, %v1849
        %1888 = vst.msk [vmem:[%s236 + $0xf8] sm:$0xff] %vm237, %v1854
        %v1889 = vsel %vm237, %v1699, 0.0
        %v1890 = vsel %vm237, %v1704, 0.0
        %v1891 = vadd.f32 %v1889, %v1890
        %v1892 = vsel %vm237, %v1709, 0.0
        %v1893 = vadd.f32 %v1891, %v1892
        %v1894 = vsel %vm237, %v1714, 0.0
        %v1895 = vadd.f32 %v1893, %v1894
        %v1896 = vsel %vm237, %v1719, 0.0
        %v1897 = vadd.f32 %v1895, %v1896
        %v1898 = vsel %vm237, %v1724, 0.0
        %v1899 = vadd.f32 %v1897, %v1898
        %v1900 = vsel %vm237, %v1729, 0.0
        %v1901 = vadd.f32 %v1899, %v1900
        %v1902 = vsel %vm237, %v1734, 0.0
        %v1903 = vadd.f32 %v1901, %v1902
        %v1904 = vsel %vm237, %v1739, 0.0
        %v1905 = vadd.f32 %v1903, %v1904
        %v1906 = vsel %vm237, %v1744, 0.0
        %v1907 = vadd.f32 %v1905, %v1906
        %v1908 = vsel %vm237, %v1749, 0.0
        %v1909 = vadd.f32 %v1907, %v1908
        %v1910 = vsel %vm237, %v1754, 0.0
        %v1911 = vadd.f32 %v1909, %v1910
        %v1912 = vsel %vm237, %v1759, 0.0
        %v1913 = vadd.f32 %v1911, %v1912
        %v1914 = vsel %vm237, %v1764, 0.0
        %v1915 = vadd.f32 %v1913, %v1914
        %v1916 = vsel %vm237, %v1769, 0.0
        %v1917 = vadd.f32 %v1915, %v1916
        %v1918 = vsel %vm237, %v1774, 0.0
        %v1919 = vadd.f32 %v1917, %v1918
        %v1920 = vsel %vm237, %v1779, 0.0
        %v1921 = vadd.f32 %v1919, %v1920
        %v1922 = vsel %vm237, %v1784, 0.0
        %v1923 = vadd.f32 %v1921, %v1922
        %v1924 = vsel %vm237, %v1789, 0.0
        %v1925 = vadd.f32 %v1923, %v1924
        %v1926 = vsel %vm237, %v1794, 0.0
        %v1927 = vadd.f32 %v1925, %v1926
        %v1928 = vsel %vm237, %v1799, 0.0
        %v1929 = vadd.f32 %v1927, %v1928
        %v1930 = vsel %vm237, %v1804, 0.0
        %v1931 = vadd.f32 %v1929, %v1930
        %v1932 = vsel %vm237, %v1809, 0.0
        %v1933 = vadd.f32 %v1931, %v1932
        %v1934 = vsel %vm237, %v1814, 0.0
        %v1935 = vadd.f32 %v1933, %v1934
        %v1936 = vsel %vm237, %v1819, 0.0
        %v1937 = vadd.f32 %v1935, %v1936
        %v1938 = vsel %vm237, %v1824, 0.0
        %v1939 = vadd.f32 %v1937, %v1938
        %v1940 = vsel %vm237, %v1829, 0.0
        %v1941 = vadd.f32 %v1939, %v1940
        %v1942 = vsel %vm237, %v1834, 0.0
        %v1943 = vadd.f32 %v1941, %v1942
        %v1944 = vsel %vm237, %v1839, 0.0
        %v1945 = vadd.f32 %v1943, %v1944
        %v1946 = vsel %vm237, %v1844, 0.0
        %v1947 = vadd.f32 %v1945, %v1946
        %v1948 = vsel %vm237, %v1849, 0.0
        %v1949 = vadd.f32 %v1947, %v1948
        %v1950 = vsel %vm237, %v1854, 0.0
        %v1951 = vadd.f32 %v1949, %v1950
        %v1952 = vrot.slane %v1951, 4
        %v1953 = vadd.f32 %v1951, %v1952
        %v1954 = vrot.slane %v1953, 2
        %v1955 = vadd.f32 %v1953, %v1954
        %v1956 = vrot.slane %v1955, 1
        %v1957 = vadd.f32 %v1955, %v1956
        %vm1958 = vcmask 122880
        %1959 = vst.msk [vmem:[%s225] sm:$0x1] %vm1958, %v1957
        %v1960 = vmul.f32 %v1699, %v1699
        %v1961 = vmul.f32 %v1704, %v1704
        %v1962 = vmul.f32 %v1709, %v1709
        %v1963 = vmul.f32 %v1714, %v1714
        %v1964 = vmul.f32 %v1719, %v1719
        %v1965 = vmul.f32 %v1724, %v1724
        %v1966 = vmul.f32 %v1729, %v1729
        %v1967 = vmul.f32 %v1734, %v1734
        %v1968 = vmul.f32 %v1739, %v1739
        %v1969 = vmul.f32 %v1744, %v1744
        %v1970 = vmul.f32 %v1749, %v1749
        %v1971 = vmul.f32 %v1754, %v1754
        %v1972 = vmul.f32 %v1759, %v1759
        %v1973 = vmul.f32 %v1764, %v1764
        %v1974 = vmul.f32 %v1769, %v1769
        %v1975 = vmul.f32 %v1774, %v1774
        %v1976 = vmul.f32 %v1779, %v1779
        %v1977 = vmul.f32 %v1784, %v1784
        %v1978 = vmul.f32 %v1789, %v1789
        %v1979 = vmul.f32 %v1794, %v1794
        %v1980 = vmul.f32 %v1799, %v1799
        %v1981 = vmul.f32 %v1804, %v1804
        %v1982 = vmul.f32 %v1809, %v1809
        %v1983 = vmul.f32 %v1814, %v1814
        %v1984 = vmul.f32 %v1819, %v1819
        %v1985 = vmul.f32 %v1824, %v1824
        %v1986 = vmul.f32 %v1829, %v1829
        %v1987 = vmul.f32 %v1834, %v1834
        %v1988 = vmul.f32 %v1839, %v1839
        %v1989 = vmul.f32 %v1844, %v1844
        %v1990 = vmul.f32 %v1849, %v1849
        %v1991 = vmul.f32 %v1854, %v1854
        %v1992 = vsel %vm237, %v1960, 0.0
        %v1993 = vsel %vm237, %v1961, 0.0
        %v1994 = vadd.f32 %v1992, %v1993
        %v1995 = vsel %vm237, %v1962, 0.0
        %v1996 = vadd.f32 %v1994, %v1995
        %v1997 = vsel %vm237, %v1963, 0.0
        %v1998 = vadd.f32 %v1996, %v1997
        %v1999 = vsel %vm237, %v1964, 0.0
        %v2000 = vadd.f32 %v1998, %v1999
        %v2001 = vsel %vm237, %v1965, 0.0
        %v2002 = vadd.f32 %v2000, %v2001
        %v2003 = vsel %vm237, %v1966, 0.0
        %v2004 = vadd.f32 %v2002, %v2003
        %v2005 = vsel %vm237, %v1967, 0.0
        %v2006 = vadd.f32 %v2004, %v2005
        %v2007 = vsel %vm237, %v1968, 0.0
        %v2008 = vadd.f32 %v2006, %v2007
        %v2009 = vsel %vm237, %v1969, 0.0
        %v2010 = vadd.f32 %v2008, %v2009
        %v2011 = vsel %vm237, %v1970, 0.0
        %v2012 = vadd.f32 %v2010, %v2011
        %v2013 = vsel %vm237, %v1971, 0.0
        %v2014 = vadd.f32 %v2012, %v2013
        %v2015 = vsel %vm237, %v1972, 0.0
        %v2016 = vadd.f32 %v2014, %v2015
        %v2017 = vsel %vm237, %v1973, 0.0
        %v2018 = vadd.f32 %v2016, %v2017
        %v2019 = vsel %vm237, %v1974, 0.0
        %v2020 = vadd.f32 %v2018, %v2019
        %v2021 = vsel %vm237, %v1975, 0.0
        %v2022 = vadd.f32 %v2020, %v2021
        %v2023 = vsel %vm237, %v1976, 0.0
        %v2024 = vadd.f32 %v2022, %v2023
        %v2025 = vsel %vm237, %v1977, 0.0
        %v2026 = vadd.f32 %v2024, %v2025
        %v2027 = vsel %vm237, %v1978, 0.0
        %v2028 = vadd.f32 %v2026, %v2027
        %v2029 = vsel %vm237, %v1979, 0.0
        %v2030 = vadd.f32 %v2028, %v2029
        %v2031 = vsel %vm237, %v1980, 0.0
        %v2032 = vadd.f32 %v2030, %v2031
        %v2033 = vsel %vm237, %v1981, 0.0
        %v2034 = vadd.f32 %v2032, %v2033
        %v2035 = vsel %vm237, %v1982, 0.0
        %v2036 = vadd.f32 %v2034, %v2035
        %v2037 = vsel %vm237, %v1983, 0.0
        %v2038 = vadd.f32 %v2036, %v2037
        %v2039 = vsel %vm237, %v1984, 0.0
        %v2040 = vadd.f32 %v2038, %v2039
        %v2041 = vsel %vm237, %v1985, 0.0
        %v2042 = vadd.f32 %v2040, %v2041
        %v2043 = vsel %vm237, %v1986, 0.0
        %v2044 = vadd.f32 %v2042, %v2043
        %v2045 = vsel %vm237, %v1987, 0.0
        %v2046 = vadd.f32 %v2044, %v2045
        %v2047 = vsel %vm237, %v1988, 0.0
        %v2048 = vadd.f32 %v2046, %v2047
        %v2049 = vsel %vm237, %v1989, 0.0
        %v2050 = vadd.f32 %v2048, %v2049
        %v2051 = vsel %vm237, %v1990, 0.0
        %v2052 = vadd.f32 %v2050, %v2051
        %v2053 = vsel %vm237, %v1991, 0.0
        %v2054 = vadd.f32 %v2052, %v2053
        %v2055 = vrot.slane %v2054, 4
        %v2056 = vadd.f32 %v2054, %v2055
        %v2057 = vrot.slane %v2056, 2
        %v2058 = vadd.f32 %v2056, %v2057
        %v2059 = vrot.slane %v2058, 1
        %v2060 = vadd.f32 %v2058, %v2059
        %2061 = vst.msk [vmem:[%s231] sm:$0x1] %vm1958, %v2060
        %p2062 = scmp.lt.s32.totalorder %s25, 1
        %s2063 = scalar_select %p2062, %s25, 1
        %s2064 = smul.addr %s2063, 32
        %s2065 = smul.addr %s2064, 8
        %s2066 = scalar_lea.vmem %s2, %s2065
        %s2067 = sand.u32 %s106, 1
        %s2068 = scalar_lea.sflag [#allocation5], %s2067
        %s2069 = sand.u32 %s106, 1
        %s2070 = scalar_lea.vmem [#allocation6], %s2069
        %s2071 = sand.u32 %s132, 1
        %s2072 = scalar_lea.sflag [#allocation8], %s2071
        %s2073 = sand.u32 %s132, 1
        %s2074 = scalar_lea.vmem [#allocation7], %s2073
        // Predicated region
        $region33: #{tpu_custom_call.1} parent=27 // pred_check
          %p2075 = pneg %p90
        $region34: #{tpu_custom_call.1} parent=27 // pred_check_branch
          %2077 = sbr.rel (%p2075) target = $region36
        $region35: #{tpu_custom_call.1} parent=27 // pred_region
          _
        $region36: #{tpu_custom_call.1} parent=27 // pred_fallthru
          _
        // Predicated region
        $region37: #{tpu_custom_call.1} parent=27 // pred_check
          %p2078 = pneg %p116
        $region38: #{tpu_custom_call.1} parent=27 // pred_check_branch
          %2080 = sbr.rel (%p2078) target = $region40
        $region39: #{tpu_custom_call.1} parent=27 // pred_region
          %s2082 = ssub.s32 16, 16
          %2083 = vsyncadd %s2068, %s2082
          %s2084 = smul.addr %s25, 16
          %s2085 = scalar_lea.hbm %s3, %s2084
          %s2087 = sshll.u32 %s2070, 4
          %s2088 = int_to_ptr.vmem [resolvable:$true] %s2087
          %2090 = dma.vmem_to_hbm [thread:$0]  %s2088, 16, %s2085, %s2068
        $region40: #{tpu_custom_call.1} parent=27 // pred_fallthru
          _
        // Predicated region
        $region41: #{tpu_custom_call.1} parent=27 // pred_check
          %p2091 = pneg %p142
        $region42: #{tpu_custom_call.1} parent=27 // pred_check_branch
          %2093 = sbr.rel (%p2091) target = $region44
        $region43: #{tpu_custom_call.1} parent=27 // pred_region
          %s2095 = ssub.s32 16, 16
          %2096 = vsyncadd %s2072, %s2095
          %s2097 = smul.addr %s25, 16
          %s2098 = scalar_lea.hbm %s4, %s2097
          %s2100 = sshll.u32 %s2074, 4
          %s2101 = int_to_ptr.vmem [resolvable:$true] %s2100
          %2103 = dma.vmem_to_hbm [thread:$0]  %s2101, 16, %s2098, %s2072
        $region44: #{tpu_custom_call.1} parent=27 // pred_fallthru
          _
      $region28: #{tpu_custom_call.1} parent=5 // pred_fallthru
        _
      %p2104 = scmp.le.s32.totalorder 2, %s20
      // Predicated region
      $region45: #{tpu_custom_call.1} parent=5 // pred_check
        %p2105 = pneg %p2104
      $region46: #{tpu_custom_call.1} parent=5 // pred_check_branch
        %2107 = sbr.rel (%p2105) target = $region48
      $region47: #{tpu_custom_call.1} parent=5 // pred_region
        %s2108 = ssub.s32 %s20, 2
        // Predicated region
        $region49: #{tpu_custom_call.1} parent=47 // pred_check
          %p2109 = pneg %p96
        $region50: #{tpu_custom_call.1} parent=47 // pred_check_branch
          %2111 = sbr.rel (%p2109) target = $region52
        $region51: #{tpu_custom_call.1} parent=47 // pred_region
          %p2112 = scmp.lt.s32.totalorder %s26, 1
          %s2113 = scalar_select %p2112, %s26, 1
          %s2114 = smul.addr %s2113, 32
          %s2115 = smul.addr %s2114, 8
          %s2116 = scalar_lea.vmem %s2, %s2115
        $region52: #{tpu_custom_call.1} parent=47 // pred_fallthru
          _
        // Predicated region
        $region53: #{tpu_custom_call.1} parent=47 // pred_check
          %p2117 = pneg %p122
        $region54: #{tpu_custom_call.1} parent=47 // pred_check_branch
          %2119 = sbr.rel (%p2117) target = $region56
        $region55: #{tpu_custom_call.1} parent=47 // pred_region
          %s2120 = sand.u32 %s107, 1
          %s2121 = scalar_lea.sflag [#allocation5], %s2120
          %s2122 = sand.u32 %s107, 1
          %s2123 = scalar_lea.vmem [#allocation6], %s2122
          %2124 = dma.done %s2121, 16
        $region56: #{tpu_custom_call.1} parent=47 // pred_fallthru
          _
        // Predicated region
        $region57: #{tpu_custom_call.1} parent=47 // pred_check
          %p2125 = pneg %p148
        $region58: #{tpu_custom_call.1} parent=47 // pred_check_branch
          %2127 = sbr.rel (%p2125) target = $region60
        $region59: #{tpu_custom_call.1} parent=47 // pred_region
          %s2128 = sand.u32 %s133, 1
          %s2129 = scalar_lea.sflag [#allocation8], %s2128
          %s2130 = sand.u32 %s133, 1
          %s2131 = scalar_lea.vmem [#allocation7], %s2130
          %2132 = dma.done %s2129, 16
        $region60: #{tpu_custom_call.1} parent=47 // pred_fallthru
          _
      $region48: #{tpu_custom_call.1} parent=5 // pred_fallthru
        _
    $region6: #{tpu_custom_call.1} parent=1 // loop_footer
      %s24 = sadd.s32 1, %s20
    $region7: #{tpu_custom_call.1} parent=1 // loop_footer_branch
      %19 = sbr.rel target = $region3
    $region8: #{tpu_custom_call.1} parent=1 // loop_exit
      _
    %2133 = vsyncpa [#allocation4], 1
    %s2134 = scalar_lea.sflag [#allocation4], 1
    %2135 = vsyncpa %s2134, 1
    %2136 = vsyncpa [#allocation5], 1
    %s2137 = scalar_lea.sflag [#allocation5], 1
    %2138 = vsyncpa %s2137, 1
    %2139 = vsyncpa [#allocation8], 1
    %s2140 = scalar_lea.sflag [#allocation8], 1
    %2141 = vsyncpa %s2140, 1

</llo_original>
